<compile_context>
chip_gen: v7x
topology: tpu7x:2x2x1
jax: 0.10.0
libtpu: 0.0.40
codegen_flags: <defaults>
</compile_context>

<pallas_src>
import functools

import jax
import jax.numpy as jnp
from jax import lax
from jax.experimental import pallas as pl
from jax.experimental.pallas import tpu as pltpu

# ----------------------------- config (small) --------------------------------
T = 16                      # number of tokens (single prefill sequence)
HIDDEN = 128                # config.hidden_size
NUM_HEADS = 4               # config.num_attention_heads
HEAD_DIM = HIDDEN // NUM_HEADS          # 32
ROTARY_DIM = 16             # config.rotary_dim
INTERMEDIATE = 4 * HIDDEN   # GPT-J n_inner default (512)
LN_EPS = 1e-5               # config.layer_norm_epsilon
DTYPE = jnp.float32
WEIGHT_DTYPE = jnp.bfloat16  # MXU operand dtype for the big matmuls


# ------------------------------ fused kernel ---------------------------------
def _gptj_layer_kernel(hid_ref, res_ref, g_ref, b_ref,
                       w1_ref, b_in_ref, w2_hbm_ref, b_out_ref,
                       cosf_ref, sinf_ref,
                       out_ref, resout_ref,
                       w2_vmem, w2_sem,
                       *, num_heads, head_dim, hidden, inter, scale, eps):
    # Start the HBM->VMEM DMA of the fused [Wo ; W_fc_out] weight immediately;
    # it is only consumed by the very last matmul, so the copy overlaps with
    # LayerNorm + the W1 matmul + RoPE + attention.
    w2_copy = pltpu.make_async_copy(w2_hbm_ref, w2_vmem, w2_sem)
    w2_copy.start()

    t = hid_ref.shape[0]

    # ---- FastLayerNorm: fused residual add + layernorm (f32 statistics) ----
    x = hid_ref[...] + res_ref[...]
    resout_ref[...] = x.astype(resout_ref.dtype)
    mean = jnp.mean(x, axis=-1, keepdims=True)
    xc = x - mean
    var = jnp.mean(xc * xc, axis=-1, keepdims=True)
    normed = xc * lax.rsqrt(var + eps) * g_ref[...] + b_ref[...]        # [T, H]
    normed_bf = normed.astype(jnp.bfloat16)

    # ---- ONE fused matmul: normed @ [Wq|Wk|Wv|W_fc_in|Wq@R|Wk@R] ----
    big = jnp.dot(normed_bf, w1_ref[...],
                  preferred_element_type=jnp.float32)                   # [T, 1152]
    q = big[:, 0 * hidden:1 * hidden]
    k = big[:, 1 * hidden:2 * hidden]
    v = big[:, 2 * hidden:3 * hidden]
    hmid = big[:, 3 * hidden:3 * hidden + inter] + b_in_ref[...]        # fc_in
    qr = big[:, 3 * hidden + inter:4 * hidden + inter]                  # rotate_half(q)
    kr = big[:, 4 * hidden + inter:5 * hidden + inter]                  # rotate_half(k)

    # ---- RoPE: x*cos + rotate_half(x)*sin; rotate_half folded into W1 ----
    cosf = cosf_ref[...]                                                # [T, H]
    sinf = sinf_ref[...]                                                # [T, H]
    q = q * cosf + qr * sinf
    k = k * cosf + kr * sinf

    # ---- GPTJMLP fc_in activation: tanh-approx GELU (f32, EUP tanh) ----
    cgelu = 0.7978845608028654  # sqrt(2/pi)
    hmid = 0.5 * hmid * (1.0 + jnp.tanh(cgelu * (hmid + 0.044715 * hmid * hmid * hmid)))
    hmid_bf = hmid.astype(jnp.bfloat16)                                 # [T, inter]

    # ---- causal attention, per head with static 32-lane slices ----
    row = lax.broadcasted_iota(jnp.int32, (t, t), 0)
    col = lax.broadcasted_iota(jnp.int32, (t, t), 1)
    causal = col <= row

    q_bf = q.astype(jnp.bfloat16)        # hoisted full-width casts (1 per tensor)
    k_bf = k.astype(jnp.bfloat16)
    v_bf = v.astype(jnp.bfloat16)

    head_outs = []
    for head in range(num_heads):
        lo = head * head_dim
        hi = lo + head_dim
        qh = q_bf[:, lo:hi]                                             # [T, D]
        kh = k_bf[:, lo:hi]
        vh = v_bf[:, lo:hi]

        s = lax.dot_general(qh, kh, (((1,), (1,)), ((), ())),
                            preferred_element_type=jnp.float32) * scale  # [T, T]
        s = jnp.where(causal, s, -1e30)       # python literal (not a captured const)
        m = jnp.max(s, axis=-1, keepdims=True)
        p = jnp.exp(s - m)
        p = p / jnp.sum(p, axis=-1, keepdims=True)
        head_outs.append(jnp.dot(p.astype(jnp.bfloat16), vh,
                                 preferred_element_type=jnp.float32))    # [T, D]
    attn_bf = jnp.concatenate(head_outs, axis=-1).astype(jnp.bfloat16)   # [T, H]

    # ---- ONE fused matmul for o_proj + fc_out + final add ----
    act = jnp.concatenate([attn_bf, hmid_bf], axis=-1)                   # [T, H+inter]
    w2_copy.wait()                                                       # W2 now in VMEM
    out = jnp.dot(act, w2_vmem[...],
                  preferred_element_type=jnp.float32) + b_out_ref[...]   # [T, H]
    out_ref[...] = out.astype(out_ref.dtype)


def gptj_layer_forward(fused, hidden_states, residual, cos_full, sin_full):
    t, h = hidden_states.shape
    w1 = fused["w1"]
    w2 = fused["w2"]
    n1 = w1.shape[1]
    inter = fused["b_fc_in"].shape[1]
    full2 = lambda i: (0, 0)

    kernel = functools.partial(
        _gptj_layer_kernel,
        num_heads=NUM_HEADS, head_dim=HEAD_DIM, hidden=HIDDEN,
        inter=INTERMEDIATE, scale=HEAD_DIM ** -0.5, eps=LN_EPS)

    # TODO(synk): kv_cache.store / kv_scales quantization, the paged_attention
    # decode path (cu_seqlen_prefill is None), and tensor-parallel sharding are
    # not modeled; only the single-sequence prefill flash path is implemented.
    # TODO(synk): at real GPT-J sizes (hidden=4096, inter=16384) the fc_in /
    # fc_out weights must go on a K/N grid axis (BlockSpec double-buffering),
    # with the N tile re-derived per generation (<=1024 cols on v7x's 64 MiB
    # VMEM vs <=2048 on v5e/v6e) and vmem_limit_bytes raised accordingly.
    # TODO(synk): for multi-sequence batches add a leading "parallel" grid axis
    # so v7x's second TensorCore is used; consider fp8 fc weights on v7x.
    return pl.pallas_call(
        kernel,
        grid=(1,),
        out_shape=(jax.ShapeDtypeStruct((t, h), hidden_states.dtype),
                   jax.ShapeDtypeStruct((t, h), hidden_states.dtype)),
        in_specs=[
            pl.BlockSpec((t, h), full2),          # hidden_states
            pl.BlockSpec((t, h), full2),          # residual
            pl.BlockSpec((1, h), full2),          # ln gamma
            pl.BlockSpec((1, h), full2),          # ln beta
            pl.BlockSpec((h, n1), full2),         # fused W1 (bf16)
            pl.BlockSpec((1, inter), full2),      # b_fc_in
            pl.BlockSpec(memory_space=pl.ANY),    # fused W2 (bf16), stays in HBM
            pl.BlockSpec((1, h), full2),          # b_fc_out
            pl.BlockSpec((t, h), full2),          # cos_full
            pl.BlockSpec((t, h), full2),          # sin_full
        ],
        out_specs=(pl.BlockSpec((t, h), full2),
                   pl.BlockSpec((t, h), full2)),
        scratch_shapes=[
            pltpu.VMEM(w2.shape, w2.dtype),       # VMEM landing buffer for W2
            pltpu.SemaphoreType.DMA,              # its DMA completion semaphore
        ],
        compiler_params=pltpu.CompilerParams(
            dimension_semantics=("arbitrary",),
            vmem_limit_bytes=32 * 1024 * 1024),
    )(hidden_states, residual, fused["ln_g"], fused["ln_b"],
      w1, fused["b_fc_in"], w2, fused["b_fc_out"], cos_full, sin_full)


# --------------------- host-side weight fusion / RoPE prep --------------------
def build_fused_weights(params):
    """One-time weight prep (host side):
       W1 = [Wq | Wk | Wv | W_fc_in | Wq@R | Wk@R]   ([H, 3H+inter+2H])
       W2 = [Wo ; W_fc_out]                          ([H+inter, H])
    where R is the signed rotate-half permutation, so Wq@R / Wk@R are exact
    signed column permutations of Wq / Wk (no numerical error)."""
    wqkv = params["wqkv"]
    wq = wqkv[:, :HIDDEN]
    wk = wqkv[:, HIDDEN:2 * HIDDEN]
    half = ROTARY_DIM // 2

    def rotate_cols(w):
        # (x @ rotate_cols(w)) == rotate_half(x @ w), per head:
        #   out[:half]     = -(x@w)[half:rot]
        #   out[half:rot]  =  (x@w)[:half]
        #   out[rot:]      =  0       (those dims are multiplied by sin==0 anyway)
        pieces = []
        for head in range(NUM_HEADS):
            base = head * HEAD_DIM
            wh = w[:, base:base + HEAD_DIM]
            pieces.append(jnp.concatenate(
                [-wh[:, half:ROTARY_DIM], wh[:, :half],
                 jnp.zeros_like(wh[:, ROTARY_DIM:])], axis=1))
        return jnp.concatenate(pieces, axis=1)

    w1 = jnp.concatenate(
        [wqkv, params["w_fc_in"], rotate_cols(wq), rotate_cols(wk)],
        axis=1).astype(WEIGHT_DTYPE)
    w2 = jnp.concatenate([params["wo"], params["w_fc_out"]],
                         axis=0).astype(WEIGHT_DTYPE)
    return {"ln_g": params["ln_g"], "ln_b": params["ln_b"],
            "w1": w1, "b_fc_in": params["b_fc_in"],
            "w2": w2, "b_fc_out": params["b_fc_out"]}


def build_rope_tables(cos, sin):
    """cos/sin [T, ROTARY_DIM//2] -> full-width [T, HIDDEN] tables
    (pass-through dims get cos=1, sin=0)."""
    ones_pass = jnp.ones((T, HEAD_DIM - ROTARY_DIM), DTYPE)
    zeros_pass = jnp.zeros((T, HEAD_DIM - ROTARY_DIM), DTYPE)
    cos_head = jnp.concatenate([cos, cos, ones_pass], axis=1)    # [T, HEAD_DIM]
    sin_head = jnp.concatenate([sin, sin, zeros_pass], axis=1)   # [T, HEAD_DIM]
    cos_full = jnp.tile(cos_head, (1, NUM_HEADS))                # [T, HIDDEN]
    sin_full = jnp.tile(sin_head, (1, NUM_HEADS))
    return cos_full, sin_full


# ------------------------------ reference ------------------------------------
def gptj_layer_reference(params, hidden_states, residual, cos, sin):
    x = hidden_states + residual
    new_residual = x
    mean = jnp.mean(x, axis=-1, keepdims=True)
    var = jnp.mean((x - mean) ** 2, axis=-1, keepdims=True)
    normed = (x - mean) / jnp.sqrt(var + LN_EPS) * params["ln_g"] + params["ln_b"]

    wqkv = params["wqkv"].astype(jnp.float32)
    wo = params["wo"].astype(jnp.float32)
    w_in = params["w_fc_in"].astype(jnp.float32)
    w_out = params["w_fc_out"].astype(jnp.float32)

    qkv = normed @ wqkv
    q, k, v = jnp.split(qkv, 3, axis=1)
    q = q.reshape(T, NUM_HEADS, HEAD_DIM)
    k = k.reshape(T, NUM_HEADS, HEAD_DIM)
    v = v.reshape(T, NUM_HEADS, HEAD_DIM)

    half = ROTARY_DIM // 2
    c = cos[:, None, :]
    s = sin[:, None, :]

    def rot(z):
        z1, z2, zp = z[..., :half], z[..., half:ROTARY_DIM], z[..., ROTARY_DIM:]
        return jnp.concatenate([z1 * c - z2 * s, z2 * c + z1 * s, zp], axis=-1)

    q, k = rot(q), rot(k)
    scale = HEAD_DIM ** -0.5
    scores = jnp.einsum("qhd,khd->hqk", q, k) * scale
    mask = jnp.tril(jnp.ones((T, T), bool))[None]
    scores = jnp.where(mask, scores, -1e30)
    p = jax.nn.softmax(scores, axis=-1)
    attn = jnp.einsum("hqk,khd->qhd", p, v).reshape(T, HIDDEN)
    attn_out = attn @ wo

    hmid = normed @ w_in + params["b_fc_in"]
    cgelu = 0.7978845608028654
    hmid = 0.5 * hmid * (1.0 + jnp.tanh(cgelu * (hmid + 0.044715 * hmid ** 3)))
    mlp_out = hmid @ w_out + params["b_fc_out"]
    return attn_out + mlp_out, new_residual


# --------------------------------- main ---------------------------------------
def make_params(key):
    ks = jax.random.split(key, 8)
    scale = 0.02
    return {
        "ln_g": (1.0 + 0.1 * jax.random.normal(ks[6], (1, HIDDEN))).astype(DTYPE),
        "ln_b": (0.1 * jax.random.normal(ks[7], (1, HIDDEN))).astype(DTYPE),
        # torch weights are [out, in]; pre-transposed here to [in, out]
        "wqkv": (scale * jax.random.normal(ks[0], (HIDDEN, 3 * HIDDEN))).astype(WEIGHT_DTYPE),
        "wo": (scale * jax.random.normal(ks[1], (HIDDEN, HIDDEN))).astype(WEIGHT_DTYPE),
        "w_fc_in": (scale * jax.random.normal(ks[2], (HIDDEN, INTERMEDIATE))).astype(WEIGHT_DTYPE),
        "b_fc_in": (scale * jax.random.normal(ks[3], (1, INTERMEDIATE))).astype(DTYPE),
        "w_fc_out": (scale * jax.random.normal(ks[4], (INTERMEDIATE, HIDDEN))).astype(WEIGHT_DTYPE),
        "b_fc_out": (scale * jax.random.normal(ks[5], (1, HIDDEN))).astype(DTYPE),
    }


if __name__ == "__main__":
    key = jax.random.PRNGKey(0)
    kp, kx, kr = jax.random.split(key, 3)
    params = make_params(kp)
    fused = build_fused_weights(params)

    hidden_states = jax.random.normal(kx, (T, HIDDEN), DTYPE)
    residual = jax.random.normal(kr, (T, HIDDEN), DTYPE)

    # rotary cos/sin tables for positions 0..T-1, ROTARY_DIM//2 frequencies
    positions = jnp.arange(T, dtype=jnp.float32)
    inv_freq = 1.0 / (10000.0 ** (jnp.arange(0, ROTARY_DIM, 2, dtype=jnp.float32)
                                  / ROTARY_DIM))
    angles = positions[:, None] * inv_freq[None, :]
    cos = jnp.cos(angles).astype(DTYPE)
    sin = jnp.sin(angles).astype(DTYPE)
    cos_full, sin_full = build_rope_tables(cos, sin)

    fwd = jax.jit(gptj_layer_forward)
    out, new_residual = fwd(fused, hidden_states, residual, cos_full, sin_full)
    jax.block_until_ready((out, new_residual))

    ref_out, ref_res = gptj_layer_reference(params, hidden_states, residual, cos, sin)
    assert out.shape == (T, HIDDEN) and new_residual.shape == (T, HIDDEN)
    assert bool(jnp.all(jnp.isfinite(out)))
    assert bool(jnp.allclose(out, ref_out, atol=1e-2, rtol=1e-2))
    assert bool(jnp.allclose(new_residual, ref_res, atol=1e-4, rtol=1e-4))
    print("KERNEL_OK")
</pallas_src>

<mosaic_0001>
module attributes {stable_mosaic.version = 11 : i64} {
  func.func @_gptj_layer_kernel(%arg0: i32, %arg1: memref<16x128xf32, #tpu.memory_space<vmem>>, %arg2: memref<16x128xf32, #tpu.memory_space<vmem>>, %arg3: memref<1x128xf32, #tpu.memory_space<vmem>>, %arg4: memref<1x128xf32, #tpu.memory_space<vmem>>, %arg5: memref<128x1152xbf16, #tpu.memory_space<vmem>>, %arg6: memref<1x512xf32, #tpu.memory_space<vmem>>, %arg7: memref<640x128xbf16, #tpu.memory_space<any>>, %arg8: memref<1x128xf32, #tpu.memory_space<vmem>>, %arg9: memref<16x128xf32, #tpu.memory_space<vmem>>, %arg10: memref<16x128xf32, #tpu.memory_space<vmem>>, %arg11: memref<16x128xf32, #tpu.memory_space<vmem>>, %arg12: memref<16x128xf32, #tpu.memory_space<vmem>>, %arg13: memref<640x128xbf16, #tpu.memory_space<vmem>>, %arg14: memref<!tpu.dma_semaphore, #tpu.memory_space<semaphore_mem>>) attributes {dimension_semantics = [#tpu.dimension_semantics<arbitrary>], iteration_bounds = array<i64: 1>, scalar_prefetch = 0 : i64, scratch_operands = 2 : i64, tpu.core_type = #tpu.core_type<tc>, window_params = [{pipeline_mode = #tpu.pipeline_mode<synchronous>, transform_indices = @transform_0, window_bounds = array<i64: 16, 128>}, {pipeline_mode = #tpu.pipeline_mode<synchronous>, transform_indices = @transform_1, window_bounds = array<i64: 16, 128>}, {pipeline_mode = #tpu.pipeline_mode<synchronous>, transform_indices = @transform_2, window_bounds = array<i64: 1, 128>}, {pipeline_mode = #tpu.pipeline_mode<synchronous>, transform_indices = @transform_3, window_bounds = array<i64: 1, 128>}, {pipeline_mode = #tpu.pipeline_mode<synchronous>, transform_indices = @transform_4, window_bounds = array<i64: 128, 1152>}, {pipeline_mode = #tpu.pipeline_mode<synchronous>, transform_indices = @transform_5, window_bounds = array<i64: 1, 512>}, {}, {pipeline_mode = #tpu.pipeline_mode<synchronous>, transform_indices = @transform_7, window_bounds = array<i64: 1, 128>}, {pipeline_mode = #tpu.pipeline_mode<synchronous>, transform_indices = @transform_8, window_bounds = array<i64: 16, 128>}, {pipeline_mode = #tpu.pipeline_mode<synchronous>, transform_indices = @transform_9, window_bounds = array<i64: 16, 128>}, {pipeline_mode = #tpu.pipeline_mode<synchronous>, transform_indices = @transform_10, window_bounds = array<i64: 16, 128>}, {pipeline_mode = #tpu.pipeline_mode<synchronous>, transform_indices = @transform_11, window_bounds = array<i64: 16, 128>}]} {
    tpu.enqueue_dma source(%arg7 : memref<640x128xbf16, #tpu.memory_space<any>>) target(%arg13 : memref<640x128xbf16, #tpu.memory_space<vmem>>) target_semaphore(%arg14 : memref<!tpu.dma_semaphore, #tpu.memory_space<semaphore_mem>>)
    %c0 = arith.constant 0 : index
    %c0_0 = arith.constant 0 : index
    %0 = vector.load %arg1[%c0, %c0_0] : memref<16x128xf32, #tpu.memory_space<vmem>>, vector<16x128xf32>
    %c0_1 = arith.constant 0 : index
    %c0_2 = arith.constant 0 : index
    %1 = vector.load %arg2[%c0_1, %c0_2] : memref<16x128xf32, #tpu.memory_space<vmem>>, vector<16x128xf32>
    %2 = arith.addf %0, %1 : vector<16x128xf32>
    %c0_3 = arith.constant 0 : index
    %c0_4 = arith.constant 0 : index
    %3 = vector.load %arg12[%c0_3, %c0_4] : memref<16x128xf32, #tpu.memory_space<vmem>>, vector<16x128xf32>
    tpu.vector_store %arg12[%c0_3, %c0_4], %2 {strides = array<i32>} : memref<16x128xf32, #tpu.memory_space<vmem>>, vector<16x128xf32>,
    %cst = arith.constant dense<0.000000e+00> : vector<16xf32>
    %4 = vector.multi_reduction <add>, %2, %cst [1] : vector<16x128xf32> to vector<16xf32>
    %5 = vector.shape_cast %4 : vector<16xf32> to vector<16x1xf32>
    %cst_5 = arith.constant 1.280000e+02 : f32
    %6 = vector.broadcast %cst_5 : f32 to vector<16x1xf32>
    %7 = arith.divf %5, %6 : vector<16x1xf32>
    %8 = vector.broadcast %7 : vector<16x1xf32> to vector<16x128xf32>
    %9 = arith.subf %2, %8 : vector<16x128xf32>
    %10 = arith.mulf %9, %9 : vector<16x128xf32>
    %cst_6 = arith.constant dense<0.000000e+00> : vector<16xf32>
    %11 = vector.multi_reduction <add>, %10, %cst_6 [1] : vector<16x128xf32> to vector<16xf32>
    %12 = vector.shape_cast %11 : vector<16xf32> to vector<16x1xf32>
    %cst_7 = arith.constant 1.280000e+02 : f32
    %13 = vector.broadcast %cst_7 : f32 to vector<16x1xf32>
    %14 = arith.divf %12, %13 : vector<16x1xf32>
    %cst_8 = arith.constant 9.99999974E-6 : f32
    %15 = vector.broadcast %cst_8 : f32 to vector<16x1xf32>
    %16 = arith.addf %14, %15 : vector<16x1xf32>
    %17 = math.rsqrt %16 : vector<16x1xf32>
    %18 = vector.broadcast %17 : vector<16x1xf32> to vector<16x128xf32>
    %19 = arith.mulf %9, %18 : vector<16x128xf32>
    %c0_9 = arith.constant 0 : index
    %c0_10 = arith.constant 0 : index
    %20 = vector.load %arg3[%c0_9, %c0_10] : memref<1x128xf32, #tpu.memory_space<vmem>>, vector<1x128xf32>
    %21 = vector.broadcast %20 : vector<1x128xf32> to vector<16x128xf32>
    %22 = arith.mulf %19, %21 : vector<16x128xf32>
    %c0_11 = arith.constant 0 : index
    %c0_12 = arith.constant 0 : index
    %23 = vector.load %arg4[%c0_11, %c0_12] : memref<1x128xf32, #tpu.memory_space<vmem>>, vector<1x128xf32>
    %24 = vector.broadcast %23 : vector<1x128xf32> to vector<16x128xf32>
    %25 = arith.addf %22, %24 : vector<16x128xf32>
    %26 = arith.truncf %25 : vector<16x128xf32> to vector<16x128xbf16>
    %c0_13 = arith.constant 0 : index
    %c0_14 = arith.constant 0 : index
    %27 = vector.load %arg5[%c0_13, %c0_14] : memref<128x1152xbf16, #tpu.memory_space<vmem>>, vector<128x1152xbf16>
    %cst_15 = arith.constant dense<0.000000e+00> : vector<16x1152xf32>
    %28 = tpu.matmul %26, %27, %cst_15 {dimension_numbers = #tpu.dot_dimension_numbers<[1], [0], [0], [1], [0, 0, 1, 1], [], []>} : vector<16x128xbf16>, vector<128x1152xbf16>, vector<16x1152xf32> -> vector<16x1152xf32>
    %29 = vector.extract_strided_slice %28 {offsets = [0, 0], sizes = [16, 128], strides = [1, 1]} : vector<16x1152xf32> to vector<16x128xf32>
    %30 = vector.extract_strided_slice %28 {offsets = [0, 128], sizes = [16, 128], strides = [1, 1]} : vector<16x1152xf32> to vector<16x128xf32>
    %31 = vector.extract_strided_slice %28 {offsets = [0, 256], sizes = [16, 128], strides = [1, 1]} : vector<16x1152xf32> to vector<16x128xf32>
    %32 = vector.extract_strided_slice %28 {offsets = [0, 384], sizes = [16, 512], strides = [1, 1]} : vector<16x1152xf32> to vector<16x512xf32>
    %c0_16 = arith.constant 0 : index
    %c0_17 = arith.constant 0 : index
    %33 = vector.load %arg6[%c0_16, %c0_17] : memref<1x512xf32, #tpu.memory_space<vmem>>, vector<1x512xf32>
    %34 = vector.broadcast %33 : vector<1x512xf32> to vector<16x512xf32>
    %35 = arith.addf %32, %34 : vector<16x512xf32>
    %36 = vector.extract_strided_slice %28 {offsets = [0, 896], sizes = [16, 128], strides = [1, 1]} : vector<16x1152xf32> to vector<16x128xf32>
    %37 = vector.extract_strided_slice %28 {offsets = [0, 1024], sizes = [16, 128], strides = [1, 1]} : vector<16x1152xf32> to vector<16x128xf32>
    %c0_18 = arith.constant 0 : index
    %c0_19 = arith.constant 0 : index
    %38 = vector.load %arg9[%c0_18, %c0_19] : memref<16x128xf32, #tpu.memory_space<vmem>>, vector<16x128xf32>
    %c0_20 = arith.constant 0 : index
    %c0_21 = arith.constant 0 : index
    %39 = vector.load %arg10[%c0_20, %c0_21] : memref<16x128xf32, #tpu.memory_space<vmem>>, vector<16x128xf32>
    %40 = arith.mulf %29, %38 : vector<16x128xf32>
    %41 = arith.mulf %36, %39 : vector<16x128xf32>
    %42 = arith.addf %40, %41 : vector<16x128xf32>
    %43 = arith.mulf %30, %38 : vector<16x128xf32>
    %44 = arith.mulf %37, %39 : vector<16x128xf32>
    %45 = arith.addf %43, %44 : vector<16x128xf32>
    %cst_22 = arith.constant 5.000000e-01 : f32
    %46 = vector.broadcast %cst_22 : f32 to vector<16x512xf32>
    %47 = arith.mulf %46, %35 : vector<16x512xf32>
    %cst_23 = arith.constant 4.471500e-02 : f32
    %48 = vector.broadcast %cst_23 : f32 to vector<16x512xf32>
    %49 = arith.mulf %48, %35 : vector<16x512xf32>
    %50 = arith.mulf %49, %35 : vector<16x512xf32>
    %51 = arith.mulf %50, %35 : vector<16x512xf32>
    %52 = arith.addf %35, %51 : vector<16x512xf32>
    %cst_24 = arith.constant 0.797884583 : f32
    %53 = vector.broadcast %cst_24 : f32 to vector<16x512xf32>
    %54 = arith.mulf %53, %52 : vector<16x512xf32>
    %55 = math.tanh %54 : vector<16x512xf32>
    %cst_25 = arith.constant 1.000000e+00 : f32
    %56 = vector.broadcast %cst_25 : f32 to vector<16x512xf32>
    %57 = arith.addf %56, %55 : vector<16x512xf32>
    %58 = arith.mulf %47, %57 : vector<16x512xf32>
    %59 = arith.truncf %58 : vector<16x512xf32> to vector<16x512xbf16>
    %60 = tpu.iota {dimensions = array<i32: 0>} : vector<16x16xi32>
    %61 = tpu.iota {dimensions = array<i32: 1>} : vector<16x16xi32>
    %62 = arith.cmpi sle, %61, %60 : vector<16x16xi32>
    %63 = arith.truncf %42 : vector<16x128xf32> to vector<16x128xbf16>
    %64 = arith.truncf %45 : vector<16x128xf32> to vector<16x128xbf16>
    %65 = arith.truncf %31 : vector<16x128xf32> to vector<16x128xbf16>
    %66 = vector.extract_strided_slice %63 {offsets = [0, 0], sizes = [16, 32], strides = [1, 1]} : vector<16x128xbf16> to vector<16x32xbf16>
    %67 = vector.extract_strided_slice %64 {offsets = [0, 0], sizes = [16, 32], strides = [1, 1]} : vector<16x128xbf16> to vector<16x32xbf16>
    %68 = vector.extract_strided_slice %65 {offsets = [0, 0], sizes = [16, 32], strides = [1, 1]} : vector<16x128xbf16> to vector<16x32xbf16>
    %cst_26 = arith.constant dense<0.000000e+00> : vector<16x16xf32>
    %69 = tpu.matmul %66, %67, %cst_26 {dimension_numbers = #tpu.dot_dimension_numbers<[1], [1], [0], [0], [0, 0, 1, 0], [], []>} : vector<16x32xbf16>, vector<16x32xbf16>, vector<16x16xf32> -> vector<16x16xf32>
    %cst_27 = arith.constant 0.176776692 : f32
    %70 = vector.broadcast %cst_27 : f32 to vector<16x16xf32>
    %71 = arith.mulf %69, %70 : vector<16x16xf32>
    %cst_28 = arith.constant -1.000000e+30 : f32
    %72 = vector.broadcast %cst_28 : f32 to vector<16x16xf32>
    %73 = arith.select %62, %71, %72 : vector<16x16xi1>, vector<16x16xf32>
    %cst_29 = arith.constant dense<0xFF800000> : vector<16xf32>
    %74 = vector.multi_reduction <maximumf>, %73, %cst_29 [1] : vector<16x16xf32> to vector<16xf32>
    %75 = vector.shape_cast %74 : vector<16xf32> to vector<16x1xf32>
    %76 = vector.broadcast %75 : vector<16x1xf32> to vector<16x16xf32>
    %77 = arith.subf %73, %76 : vector<16x16xf32>
    %78 = math.exp %77 : vector<16x16xf32>
    %cst_30 = arith.constant dense<0.000000e+00> : vector<16xf32>
    %79 = vector.multi_reduction <add>, %78, %cst_30 [1] : vector<16x16xf32> to vector<16xf32>
    %80 = vector.shape_cast %79 : vector<16xf32> to vector<16x1xf32>
    %81 = vector.broadcast %80 : vector<16x1xf32> to vector<16x16xf32>
    %82 = arith.divf %78, %81 : vector<16x16xf32>
    %83 = arith.truncf %82 : vector<16x16xf32> to vector<16x16xbf16>
    %cst_31 = arith.constant dense<0.000000e+00> : vector<16x32xf32>
    %84 = tpu.matmul %83, %68, %cst_31 {dimension_numbers = #tpu.dot_dimension_numbers<[1], [0], [0], [1], [0, 0, 1, 1], [], []>} : vector<16x16xbf16>, vector<16x32xbf16>, vector<16x32xf32> -> vector<16x32xf32>
    %85 = vector.extract_strided_slice %63 {offsets = [0, 32], sizes = [16, 32], strides = [1, 1]} : vector<16x128xbf16> to vector<16x32xbf16>
    %86 = vector.extract_strided_slice %64 {offsets = [0, 32], sizes = [16, 32], strides = [1, 1]} : vector<16x128xbf16> to vector<16x32xbf16>
    %87 = vector.extract_strided_slice %65 {offsets = [0, 32], sizes = [16, 32], strides = [1, 1]} : vector<16x128xbf16> to vector<16x32xbf16>
    %cst_32 = arith.constant dense<0.000000e+00> : vector<16x16xf32>
    %88 = tpu.matmul %85, %86, %cst_32 {dimension_numbers = #tpu.dot_dimension_numbers<[1], [1], [0], [0], [0, 0, 1, 0], [], []>} : vector<16x32xbf16>, vector<16x32xbf16>, vector<16x16xf32> -> vector<16x16xf32>
    %cst_33 = arith.constant 0.176776692 : f32
    %89 = vector.broadcast %cst_33 : f32 to vector<16x16xf32>
    %90 = arith.mulf %88, %89 : vector<16x16xf32>
    %cst_34 = arith.constant -1.000000e+30 : f32
    %91 = vector.broadcast %cst_34 : f32 to vector<16x16xf32>
    %92 = arith.select %62, %90, %91 : vector<16x16xi1>, vector<16x16xf32>
    %cst_35 = arith.constant dense<0xFF800000> : vector<16xf32>
    %93 = vector.multi_reduction <maximumf>, %92, %cst_35 [1] : vector<16x16xf32> to vector<16xf32>
    %94 = vector.shape_cast %93 : vector<16xf32> to vector<16x1xf32>
    %95 = vector.broadcast %94 : vector<16x1xf32> to vector<16x16xf32>
    %96 = arith.subf %92, %95 : vector<16x16xf32>
    %97 = math.exp %96 : vector<16x16xf32>
    %cst_36 = arith.constant dense<0.000000e+00> : vector<16xf32>
    %98 = vector.multi_reduction <add>, %97, %cst_36 [1] : vector<16x16xf32> to vector<16xf32>
    %99 = vector.shape_cast %98 : vector<16xf32> to vector<16x1xf32>
    %100 = vector.broadcast %99 : vector<16x1xf32> to vector<16x16xf32>
    %101 = arith.divf %97, %100 : vector<16x16xf32>
    %102 = arith.truncf %101 : vector<16x16xf32> to vector<16x16xbf16>
    %cst_37 = arith.constant dense<0.000000e+00> : vector<16x32xf32>
    %103 = tpu.matmul %102, %87, %cst_37 {dimension_numbers = #tpu.dot_dimension_numbers<[1], [0], [0], [1], [0, 0, 1, 1], [], []>} : vector<16x16xbf16>, vector<16x32xbf16>, vector<16x32xf32> -> vector<16x32xf32>
    %104 = vector.extract_strided_slice %63 {offsets = [0, 64], sizes = [16, 32], strides = [1, 1]} : vector<16x128xbf16> to vector<16x32xbf16>
    %105 = vector.extract_strided_slice %64 {offsets = [0, 64], sizes = [16, 32], strides = [1, 1]} : vector<16x128xbf16> to vector<16x32xbf16>
    %106 = vector.extract_strided_slice %65 {offsets = [0, 64], sizes = [16, 32], strides = [1, 1]} : vector<16x128xbf16> to vector<16x32xbf16>
    %cst_38 = arith.constant dense<0.000000e+00> : vector<16x16xf32>
    %107 = tpu.matmul %104, %105, %cst_38 {dimension_numbers = #tpu.dot_dimension_numbers<[1], [1], [0], [0], [0, 0, 1, 0], [], []>} : vector<16x32xbf16>, vector<16x32xbf16>, vector<16x16xf32> -> vector<16x16xf32>
    %cst_39 = arith.constant 0.176776692 : f32
    %108 = vector.broadcast %cst_39 : f32 to vector<16x16xf32>
    %109 = arith.mulf %107, %108 : vector<16x16xf32>
    %cst_40 = arith.constant -1.000000e+30 : f32
    %110 = vector.broadcast %cst_40 : f32 to vector<16x16xf32>
    %111 = arith.select %62, %109, %110 : vector<16x16xi1>, vector<16x16xf32>
    %cst_41 = arith.constant dense<0xFF800000> : vector<16xf32>
    %112 = vector.multi_reduction <maximumf>, %111, %cst_41 [1] : vector<16x16xf32> to vector<16xf32>
    %113 = vector.shape_cast %112 : vector<16xf32> to vector<16x1xf32>
    %114 = vector.broadcast %113 : vector<16x1xf32> to vector<16x16xf32>
    %115 = arith.subf %111, %114 : vector<16x16xf32>
    %116 = math.exp %115 : vector<16x16xf32>
    %cst_42 = arith.constant dense<0.000000e+00> : vector<16xf32>
    %117 = vector.multi_reduction <add>, %116, %cst_42 [1] : vector<16x16xf32> to vector<16xf32>
    %118 = vector.shape_cast %117 : vector<16xf32> to vector<16x1xf32>
    %119 = vector.broadcast %118 : vector<16x1xf32> to vector<16x16xf32>
    %120 = arith.divf %116, %119 : vector<16x16xf32>
    %121 = arith.truncf %120 : vector<16x16xf32> to vector<16x16xbf16>
    %cst_43 = arith.constant dense<0.000000e+00> : vector<16x32xf32>
    %122 = tpu.matmul %121, %106, %cst_43 {dimension_numbers = #tpu.dot_dimension_numbers<[1], [0], [0], [1], [0, 0, 1, 1], [], []>} : vector<16x16xbf16>, vector<16x32xbf16>, vector<16x32xf32> -> vector<16x32xf32>
    %123 = vector.extract_strided_slice %63 {offsets = [0, 96], sizes = [16, 32], strides = [1, 1]} : vector<16x128xbf16> to vector<16x32xbf16>
    %124 = vector.extract_strided_slice %64 {offsets = [0, 96], sizes = [16, 32], strides = [1, 1]} : vector<16x128xbf16> to vector<16x32xbf16>
    %125 = vector.extract_strided_slice %65 {offsets = [0, 96], sizes = [16, 32], strides = [1, 1]} : vector<16x128xbf16> to vector<16x32xbf16>
    %cst_44 = arith.constant dense<0.000000e+00> : vector<16x16xf32>
    %126 = tpu.matmul %123, %124, %cst_44 {dimension_numbers = #tpu.dot_dimension_numbers<[1], [1], [0], [0], [0, 0, 1, 0], [], []>} : vector<16x32xbf16>, vector<16x32xbf16>, vector<16x16xf32> -> vector<16x16xf32>
    %cst_45 = arith.constant 0.176776692 : f32
    %127 = vector.broadcast %cst_45 : f32 to vector<16x16xf32>
    %128 = arith.mulf %126, %127 : vector<16x16xf32>
    %cst_46 = arith.constant -1.000000e+30 : f32
    %129 = vector.broadcast %cst_46 : f32 to vector<16x16xf32>
    %130 = arith.select %62, %128, %129 : vector<16x16xi1>, vector<16x16xf32>
    %cst_47 = arith.constant dense<0xFF800000> : vector<16xf32>
    %131 = vector.multi_reduction <maximumf>, %130, %cst_47 [1] : vector<16x16xf32> to vector<16xf32>
    %132 = vector.shape_cast %131 : vector<16xf32> to vector<16x1xf32>
    %133 = vector.broadcast %132 : vector<16x1xf32> to vector<16x16xf32>
    %134 = arith.subf %130, %133 : vector<16x16xf32>
    %135 = math.exp %134 : vector<16x16xf32>
    %cst_48 = arith.constant dense<0.000000e+00> : vector<16xf32>
    %136 = vector.multi_reduction <add>, %135, %cst_48 [1] : vector<16x16xf32> to vector<16xf32>
    %137 = vector.shape_cast %136 : vector<16xf32> to vector<16x1xf32>
    %138 = vector.broadcast %137 : vector<16x1xf32> to vector<16x16xf32>
    %139 = arith.divf %135, %138 : vector<16x16xf32>
    %140 = arith.truncf %139 : vector<16x16xf32> to vector<16x16xbf16>
    %cst_49 = arith.constant dense<0.000000e+00> : vector<16x32xf32>
    %141 = tpu.matmul %140, %125, %cst_49 {dimension_numbers = #tpu.dot_dimension_numbers<[1], [0], [0], [1], [0, 0, 1, 1], [], []>} : vector<16x16xbf16>, vector<16x32xbf16>, vector<16x32xf32> -> vector<16x32xf32>
    %142 = tpu.concatenate %84, %103, %122, %141 in 1 : vector<16x32xf32>, vector<16x32xf32>, vector<16x32xf32>, vector<16x32xf32> -> vector<16x128xf32>
    %143 = arith.truncf %142 : vector<16x128xf32> to vector<16x128xbf16>
    %144 = tpu.concatenate %143, %59 in 1 : vector<16x128xbf16>, vector<16x512xbf16> -> vector<16x640xbf16>
    tpu.wait_dma2 semaphore(%arg14 : memref<!tpu.dma_semaphore, #tpu.memory_space<semaphore_mem>>) src(%arg7 : memref<640x128xbf16, #tpu.memory_space<any>>) dst(%arg13 : memref<640x128xbf16, #tpu.memory_space<vmem>>)
    %c0_50 = arith.constant 0 : index
    %c0_51 = arith.constant 0 : index
    %145 = vector.load %arg13[%c0_50, %c0_51] : memref<640x128xbf16, #tpu.memory_space<vmem>>, vector<640x128xbf16>
    %cst_52 = arith.constant dense<0.000000e+00> : vector<16x128xf32>
    %146 = tpu.matmul %144, %145, %cst_52 {dimension_numbers = #tpu.dot_dimension_numbers<[1], [0], [0], [1], [0, 0, 1, 1], [], []>} : vector<16x640xbf16>, vector<640x128xbf16>, vector<16x128xf32> -> vector<16x128xf32>
    %c0_53 = arith.constant 0 : index
    %c0_54 = arith.constant 0 : index
    %147 = vector.load %arg8[%c0_53, %c0_54] : memref<1x128xf32, #tpu.memory_space<vmem>>, vector<1x128xf32>
    %148 = vector.broadcast %147 : vector<1x128xf32> to vector<16x128xf32>
    %149 = arith.addf %146, %148 : vector<16x128xf32>
    %c0_55 = arith.constant 0 : index
    %c0_56 = arith.constant 0 : index
    %150 = vector.load %arg11[%c0_55, %c0_56] : memref<16x128xf32, #tpu.memory_space<vmem>>, vector<16x128xf32>
    tpu.vector_store %arg11[%c0_55, %c0_56], %149 {strides = array<i32>} : memref<16x128xf32, #tpu.memory_space<vmem>>, vector<16x128xf32>,
    return
  }
  func.func @transform_0(%arg0: i32) -> (i32, i32) {
    %c0_i32 = arith.constant 0 : i32
    %c0_i32_0 = arith.constant 0 : i32
    %c0_i32_1 = arith.constant 0 : i32
    return %c0_i32, %c0_i32_0 : i32, i32
  }
  func.func @transform_1(%arg0: i32) -> (i32, i32) {
    %c0_i32 = arith.constant 0 : i32
    %c0_i32_0 = arith.constant 0 : i32
    %c0_i32_1 = arith.constant 0 : i32
    return %c0_i32, %c0_i32_0 : i32, i32
  }
  func.func @transform_2(%arg0: i32) -> (i32, i32) {
    %c0_i32 = arith.constant 0 : i32
    %c0_i32_0 = arith.constant 0 : i32
    %c0_i32_1 = arith.constant 0 : i32
    return %c0_i32, %c0_i32_0 : i32, i32
  }
  func.func @transform_3(%arg0: i32) -> (i32, i32) {
    %c0_i32 = arith.constant 0 : i32
    %c0_i32_0 = arith.constant 0 : i32
    %c0_i32_1 = arith.constant 0 : i32
    return %c0_i32, %c0_i32_0 : i32, i32
  }
  func.func @transform_4(%arg0: i32) -> (i32, i32) {
    %c0_i32 = arith.constant 0 : i32
    %c0_i32_0 = arith.constant 0 : i32
    %c0_i32_1 = arith.constant 0 : i32
    return %c0_i32, %c0_i32_0 : i32, i32
  }
  func.func @transform_5(%arg0: i32) -> (i32, i32) {
    %c0_i32 = arith.constant 0 : i32
    %c0_i32_0 = arith.constant 0 : i32
    %c0_i32_1 = arith.constant 0 : i32
    return %c0_i32, %c0_i32_0 : i32, i32
  }
  func.func @transform_7(%arg0: i32) -> (i32, i32) {
    %c0_i32 = arith.constant 0 : i32
    %c0_i32_0 = arith.constant 0 : i32
    %c0_i32_1 = arith.constant 0 : i32
    return %c0_i32, %c0_i32_0 : i32, i32
  }
  func.func @transform_8(%arg0: i32) -> (i32, i32) {
    %c0_i32 = arith.constant 0 : i32
    %c0_i32_0 = arith.constant 0 : i32
    %c0_i32_1 = arith.constant 0 : i32
    return %c0_i32, %c0_i32_0 : i32, i32
  }
  func.func @transform_9(%arg0: i32) -> (i32, i32) {
    %c0_i32 = arith.constant 0 : i32
    %c0_i32_0 = arith.constant 0 : i32
    %c0_i32_1 = arith.constant 0 : i32
    return %c0_i32, %c0_i32_0 : i32, i32
  }
  func.func @transform_10(%arg0: i32) -> (i32, i32) {
    %c0_i32 = arith.constant 0 : i32
    %c0_i32_0 = arith.constant 0 : i32
    %c0_i32_1 = arith.constant 0 : i32
    return %c0_i32, %c0_i32_0 : i32, i32
  }
  func.func @transform_11(%arg0: i32) -> (i32, i32) {
    %c0_i32 = arith.constant 0 : i32
    %c0_i32_0 = arith.constant 0 : i32
    %c0_i32_1 = arith.constant 0 : i32
    return %c0_i32, %c0_i32_0 : i32, i32
  }
}

</mosaic_0001>

<llo_original>
// kernel: gptj_layer_forward.1
$region0: #{gptj_layer_forward.1}
  #allocation0 [shape = 'u32[]', space=smem, size = 0x4, offset = 0x4, fixed_abs, tag = 'smem constant byte address 0x4 - core index']
  #allocation1 [shape = 'u32[144,128]{1,0:T(1,128)}', space=vmem, size = 0x12000, scoped, tag = 'internal scratch']
  #allocation2 [shape = 'bf16[640,128]{1,0:T(16,128)(2,1)}', space=vmem, size = 0x28000, scoped, tag = 'scratch operand']
  #allocation3 [shape = 's32[1]{0}', space=sflag, size = 0x4, scoped, tag = 'scratch operand']
  #allocation16 [shape = 's32[]', space=sflag, size = 0x4, offset = 0, fixed_abs, tag = 'sflag constant byte address 0x0 - dummy sync flag']
  #allocation17 [shape = 's32[]', space=sflag, size = 0x4, offset = 0, fixed_abs, tag = 'sflag constant byte address 0x0 - dummy sync flag']
  #allocation18 [shape = 'u32[]', space=smem, size = 0x4, offset = 0x44, fixed_abs, tag = 'smem constant byte address 0x44 - assertion arg 0']
  #allocation19 [shape = 'u32[]', space=smem, size = 0x4, offset = 0x48, fixed_abs, tag = 'smem constant byte address 0x48 - assertion arg 1']
  %s0 = inlined_call_operand.vmem [shape: f32[16,128], index: 0, kind: input, shape index: {}]
  %s1 = inlined_call_operand.hbm [shape: f32[16,128], index: 1, kind: input, shape index: {}]
  %s2 = inlined_call_operand.vmem [shape: f32[1,128], index: 2, kind: input, shape index: {}]
  %s3 = inlined_call_operand.vmem [shape: f32[1,128], index: 3, kind: input, shape index: {}]
  %s4 = inlined_call_operand.hbm [shape: bf16[128,1152], index: 4, kind: input, shape index: {}]
  %s5 = inlined_call_operand.hbm [shape: f32[1,512], index: 5, kind: input, shape index: {}]
  %s6 = inlined_call_operand.hbm [shape: bf16[640,128], index: 6, kind: input, shape index: {}]
  %s7 = inlined_call_operand.hbm [shape: f32[1,128], index: 7, kind: input, shape index: {}]
  %s8 = inlined_call_operand.hbm [shape: f32[16,128], index: 8, kind: input, shape index: {}]
  %s9 = inlined_call_operand.vmem [shape: f32[16,128], index: 9, kind: input, shape index: {}]
  %s10 = inlined_call_operand.hbm [shape: f32[16,128], index: 10, kind: output, shape index: {0}]
  %s11 = inlined_call_operand.hbm [shape: f32[16,128], index: 11, kind: output, shape index: {1}]
  %12 = xla_tuple %s10, %s11
  %s13 = sld [smem:[#allocation0]]
  $region78: #{gptj_layer_forward.1} parent=0
    _
  %s15 = ssub.s32 1, %s13
  %s16 = scalar_select 0, %s15, %s13
  $region1: #{gptj_layer_forward.1} parent=0
    #allocation4 [shape = 'u8[8192]{0}', space=vmem, size = 0x2000, scoped, tag = 'input window, operand 1, single buffered']
    #allocation5 [shape = 's32[1]{0}', space=sflag, size = 0x4, scoped, tag = 'scoped memory for gptj_layer_forward.1']
    #allocation6 [shape = 's32[1]{0}', space=sflag, size = 0x4, scoped, tag = 'scoped memory for gptj_layer_forward.1']
    #allocation7 [shape = 'u8[294912]{0}', space=vmem, size = 0x48000, scoped, tag = 'input window, operand 4, single buffered']
    #allocation8 [shape = 's32[1]{0}', space=sflag, size = 0x4, scoped, tag = 'scoped memory for gptj_layer_forward.1']
    #allocation9 [shape = 'u8[2048]{0}', space=vmem, size = 0x800, scoped, tag = 'input window, operand 5, single buffered']
    #allocation10 [shape = 'u8[512]{0}', space=vmem, size = 0x400, scoped, tag = 'input window, operand 7, single buffered']
    #allocation11 [shape = 's32[1]{0}', space=sflag, size = 0x4, scoped, tag = 'scoped memory for gptj_layer_forward.1']
    #allocation12 [shape = 'u8[8192]{0}', space=vmem, size = 0x2000, scoped, tag = 'input window, operand 8, single buffered']
    #allocation13 [shape = 'u8[8192]{0}', space=vmem, size = 0x2000, scoped, tag = 'output window, operand 0, single buffered']
    #allocation14 [shape = 'u8[8192]{0}', space=vmem, size = 0x2000, scoped, tag = 'output window, operand 1, single buffered']
    #allocation15 [shape = 's32[1]{0}', space=sflag, size = 0x4, scoped, tag = 'scoped memory for gptj_layer_forward.1']
    %17 = vsyncpa [#allocation5], 0
    %18 = vsyncpa [#allocation8], 0
    %19 = vsyncpa [#allocation11], 0
    %20 = vsyncpa [#allocation6], 0
    %21 = vsyncpa [#allocation15], 0
    // Predicated region
    $region2: #{gptj_layer_forward.1} parent=1 // pred_check
      _
    $region3: #{gptj_layer_forward.1} parent=1 // pred_check_branch
      %23 = sbr.rel (0) target = $region5
    $region4: #{gptj_layer_forward.1} parent=1 // pred_region
      _
    $region5: #{gptj_layer_forward.1} parent=1 // pred_fallthru
      _
    // Predicated region
    $region6: #{gptj_layer_forward.1} parent=1 // pred_check
      _
    $region7: #{gptj_layer_forward.1} parent=1 // pred_check_branch
      %25 = sbr.rel (0) target = $region9
    $region8: #{gptj_layer_forward.1} parent=1 // pred_region
      %s27 = ssub.s32 256, 256
      %28 = vsyncadd [#allocation5], %s27
      %s29 = sshll.u32 [#allocation4], 4
      %s30 = int_to_ptr.vmem [resolvable:$true] %s29
      %35 = dma.hbm_to_vmem [thread:$0]  %s1, 256, %s30, [#allocation5], 128, 128, 8
    $region9: #{gptj_layer_forward.1} parent=1 // pred_fallthru
      _
    // Predicated region
    $region10: #{gptj_layer_forward.1} parent=1 // pred_check
      _
    $region11: #{gptj_layer_forward.1} parent=1 // pred_check_branch
      %37 = sbr.rel (0) target = $region13
    $region12: #{gptj_layer_forward.1} parent=1 // pred_region
      _
    $region13: #{gptj_layer_forward.1} parent=1 // pred_fallthru
      _
    // Predicated region
    $region14: #{gptj_layer_forward.1} parent=1 // pred_check
      _
    $region15: #{gptj_layer_forward.1} parent=1 // pred_check_branch
      %39 = sbr.rel (0) target = $region17
    $region16: #{gptj_layer_forward.1} parent=1 // pred_region
      _
    $region17: #{gptj_layer_forward.1} parent=1 // pred_fallthru
      _
    // Predicated region
    $region18: #{gptj_layer_forward.1} parent=1 // pred_check
      _
    $region19: #{gptj_layer_forward.1} parent=1 // pred_check_branch
      %41 = sbr.rel (0) target = $region21
    $region20: #{gptj_layer_forward.1} parent=1 // pred_region
      %s43 = ssub.s32 9216, 9216
      %44 = vsyncadd [#allocation8], %s43
      %s45 = sshll.u32 [#allocation7], 4
      %s46 = int_to_ptr.vmem [resolvable:$true] %s45
      %51 = dma.hbm_to_vmem [thread:$0]  %s4, 9216, %s46, [#allocation8], 576, 576, 36
    $region21: #{gptj_layer_forward.1} parent=1 // pred_fallthru
      _
    // Predicated region
    $region22: #{gptj_layer_forward.1} parent=1 // pred_check
      _
    $region23: #{gptj_layer_forward.1} parent=1 // pred_check_branch
      %53 = sbr.rel (0) target = $region25
    $region24: #{gptj_layer_forward.1} parent=1 // pred_region
      %s55 = ssub.s32 64, 64
      %56 = vsyncadd [#allocation8], %s55
      %s58 = sshll.u32 [#allocation9], 4
      %s59 = int_to_ptr.vmem [resolvable:$true] %s58
      %61 = dma.hbm_to_vmem [thread:$0]  %s5, 64, %s59, [#allocation8]
    $region25: #{gptj_layer_forward.1} parent=1 // pred_fallthru
      _
    // Predicated region
    $region26: #{gptj_layer_forward.1} parent=1 // pred_check
      _
    $region27: #{gptj_layer_forward.1} parent=1 // pred_check_branch
      %63 = sbr.rel (0) target = $region29
    $region28: #{gptj_layer_forward.1} parent=1 // pred_region
      %s65 = ssub.s32 16, 16
      %66 = vsyncadd [#allocation11], %s65
      %s68 = sshll.u32 [#allocation10], 4
      %s69 = int_to_ptr.vmem [resolvable:$true] %s68
      %71 = dma.hbm_to_vmem [thread:$0]  %s7, 16, %s69, [#allocation11]
    $region29: #{gptj_layer_forward.1} parent=1 // pred_fallthru
      _
    // Predicated region
    $region30: #{gptj_layer_forward.1} parent=1 // pred_check
      _
    $region31: #{gptj_layer_forward.1} parent=1 // pred_check_branch
      %73 = sbr.rel (0) target = $region33
    $region32: #{gptj_layer_forward.1} parent=1 // pred_region
      %s75 = ssub.s32 256, 256
      %76 = vsyncadd [#allocation11], %s75
      %s77 = sshll.u32 [#allocation12], 4
      %s78 = int_to_ptr.vmem [resolvable:$true] %s77
      %83 = dma.hbm_to_vmem [thread:$0]  %s8, 256, %s78, [#allocation11], 128, 128, 8
    $region33: #{gptj_layer_forward.1} parent=1 // pred_fallthru
      _
    // Predicated region
    $region34: #{gptj_layer_forward.1} parent=1 // pred_check
      _
    $region35: #{gptj_layer_forward.1} parent=1 // pred_check_branch
      %85 = sbr.rel (0) target = $region37
    $region36: #{gptj_layer_forward.1} parent=1 // pred_region
      _
    $region37: #{gptj_layer_forward.1} parent=1 // pred_fallthru
      _
    // Predicated region
    $region38: #{gptj_layer_forward.1} parent=1 // pred_check
      _
    $region39: #{gptj_layer_forward.1} parent=1 // pred_check_branch
      %87 = sbr.rel (0) target = $region41
    $region40: #{gptj_layer_forward.1} parent=1 // pred_region
      %88 = dma.done [#allocation5], 256
    $region41: #{gptj_layer_forward.1} parent=1 // pred_fallthru
      _
    // Predicated region
    $region42: #{gptj_layer_forward.1} parent=1 // pred_check
      _
    $region43: #{gptj_layer_forward.1} parent=1 // pred_check_branch
      %90 = sbr.rel (0) target = $region45
    $region44: #{gptj_layer_forward.1} parent=1 // pred_region
      %91 = dma.done [#allocation8], 9216
    $region45: #{gptj_layer_forward.1} parent=1 // pred_fallthru
      _
    // Predicated region
    $region46: #{gptj_layer_forward.1} parent=1 // pred_check
      _
    $region47: #{gptj_layer_forward.1} parent=1 // pred_check_branch
      %93 = sbr.rel (0) target = $region49
    $region48: #{gptj_layer_forward.1} parent=1 // pred_region
      %94 = dma.done [#allocation8], 64
    $region49: #{gptj_layer_forward.1} parent=1 // pred_fallthru
      _
    // Predicated region
    $region50: #{gptj_layer_forward.1} parent=1 // pred_check
      _
    $region51: #{gptj_layer_forward.1} parent=1 // pred_check_branch
      %96 = sbr.rel (0) target = $region53
    $region52: #{gptj_layer_forward.1} parent=1 // pred_region
      %97 = dma.done [#allocation11], 16
    $region53: #{gptj_layer_forward.1} parent=1 // pred_fallthru
      _
    // Predicated region
    $region54: #{gptj_layer_forward.1} parent=1 // pred_check
      _
    $region55: #{gptj_layer_forward.1} parent=1 // pred_check_branch
      %99 = sbr.rel (0) target = $region57
    $region56: #{gptj_layer_forward.1} parent=1 // pred_region
      %100 = dma.done [#allocation11], 256
    $region57: #{gptj_layer_forward.1} parent=1 // pred_fallthru
      _
    // Predicated region
    $region58: #{gptj_layer_forward.1} parent=1 // pred_check
      _
    $region59: #{gptj_layer_forward.1} parent=1 // pred_check_branch
      %103 = sbr.rel target = $region61
    $region60: #{gptj_layer_forward.1} parent=1 // pred_region
      %104 = sst [smem:[#allocation18]] [#allocation17]
      %105 = sst [smem:[#allocation19]] [#allocation16]
    $region61: #{gptj_layer_forward.1} parent=1 // pred_fallthru
      _
    %107 = shalt.err (0)
    %s109 = sshll.u32 [#allocation2], 4
    %s110 = int_to_ptr.vmem [resolvable:$true] %s109
    %112 = dma.hbm_to_vmem [thread:$0]  %s6, 5120, %s110, [#allocation3]
    %v113 = vld [vmem:[%s0] sm:$0xff]
    %v114 = vld [vmem:[%s0 + $0x8] sm:$0xff]
    %v115 = vld [vmem:[#allocation4] sm:$0xff]
    %v116 = vld [vmem:[#allocation4 + $0x8] sm:$0xff]
    %v117 = vadd.f32 %v113, %v115
    %v118 = vadd.f32 %v114, %v116
    %119 = vst [vmem:[#allocation14] sm:$0xff] %v117
    %120 = vst [vmem:[#allocation14 + $0x8] sm:$0xff] %v118
    %121 = vadd.xlane.f32.xlu0 %v117
    %v122 = vpop.xlane.xlu0 %121
    %123 = vadd.xlane.f32.xlu0 %v118
    %v124 = vpop.xlane.xlu0 %123
    %v125 = vrcp.pop 128.0
    %v126 = vmul.f32 %v122, %v125
    %v127 = vmul.f32 %v124, %v125
    %v128 = vsub.f32 %v117, %v126
    %v129 = vsub.f32 %v118, %v127
    %v130 = vmul.f32 %v128, %v128
    %v131 = vmul.f32 %v129, %v129
    %132 = vadd.xlane.f32.xlu0 %v130
    %v133 = vpop.xlane.xlu0 %132
    %134 = vadd.xlane.f32.xlu0 %v131
    %v135 = vpop.xlane.xlu0 %134
    %v136 = vmul.f32 %v133, %v125
    %v137 = vmul.f32 %v135, %v125
    %v138 = vadd.f32 %v136, 1e-05
    %v139 = vadd.f32 %v137, 1e-05
    %v140 = vrsqrt.pop %v138
    %v141 = vrsqrt.pop %v139
    %v142 = vmul.f32 %v128, %v140
    %v143 = vmul.f32 %v129, %v141
    %v144 = vld [vmem:[%s2] sm:$0x1]
    %v146 = vlaneseq
    %v147 = vshrl.u32 %v146, 7
    %v148 = vsub.s32 0, %v147
    %v149 = vrot.slane %v144, %v148
    %v151 = vmul.f32 %v142, %v149
    %v152 = vmul.f32 %v143, %v149
    %v153 = vld [vmem:[%s3] sm:$0x1]
    %v155 = vlaneseq
    %v156 = vshrl.u32 %v155, 7
    %v157 = vsub.s32 0, %v156
    %v158 = vrot.slane %v153, %v157
    %v160 = vadd.f32 %v151, %v158
    %v161 = vadd.f32 %v152, %v158
    %v162 = vpack.c.bf16 %v161, %v160
    %v163 = vld [vmem:[#allocation7] sm:$0xff]
    %v164 = vld [vmem:[#allocation7 + $0x8] sm:$0xff]
    %v165 = vld [vmem:[#allocation7 + $0x10] sm:$0xff]
    %v166 = vld [vmem:[#allocation7 + $0x18] sm:$0xff]
    %v167 = vld [vmem:[#allocation7 + $0x20] sm:$0xf]
    %v168 = vld [vmem:[#allocation7 + $0x24] sm:$0xff]
    %v169 = vld [vmem:[#allocation7 + $0x2c] sm:$0xff]
    %v170 = vld [vmem:[#allocation7 + $0x34] sm:$0xff]
    %v171 = vld [vmem:[#allocation7 + $0x3c] sm:$0xff]
    %v172 = vld [vmem:[#allocation7 + $0x44] sm:$0xf]
    %v173 = vld [vmem:[#allocation7 + $0x48] sm:$0xff]
    %v174 = vld [vmem:[#allocation7 + $0x50] sm:$0xff]
    %v175 = vld [vmem:[#allocation7 + $0x58] sm:$0xff]
    %v176 = vld [vmem:[#allocation7 + $0x60] sm:$0xff]
    %v177 = vld [vmem:[#allocation7 + $0x68] sm:$0xf]
    %v178 = vld [vmem:[#allocation7 + $0x6c] sm:$0xff]
    %v179 = vld [vmem:[#allocation7 + $0x74] sm:$0xff]
    %v180 = vld [vmem:[#allocation7 + $0x7c] sm:$0xff]
    %v181 = vld [vmem:[#allocation7 + $0x84] sm:$0xff]
    %v182 = vld [vmem:[#allocation7 + $0x8c] sm:$0xf]
    %v183 = vld [vmem:[#allocation7 + $0x90] sm:$0xff]
    %v184 = vld [vmem:[#allocation7 + $0x98] sm:$0xff]
    %v185 = vld [vmem:[#allocation7 + $0xa0] sm:$0xff]
    %v186 = vld [vmem:[#allocation7 + $0xa8] sm:$0xff]
    %v187 = vld [vmem:[#allocation7 + $0xb0] sm:$0xf]
    %v188 = vld [vmem:[#allocation7 + $0xb4] sm:$0xff]
    %v189 = vld [vmem:[#allocation7 + $0xbc] sm:$0xff]
    %v190 = vld [vmem:[#allocation7 + $0xc4] sm:$0xff]
    %v191 = vld [vmem:[#allocation7 + $0xcc] sm:$0xff]
    %v192 = vld [vmem:[#allocation7 + $0xd4] sm:$0xf]
    %v193 = vld [vmem:[#allocation7 + $0xd8] sm:$0xff]
    %v194 = vld [vmem:[#allocation7 + $0xe0] sm:$0xff]
    %v195 = vld [vmem:[#allocation7 + $0xe8] sm:$0xff]
    %v196 = vld [vmem:[#allocation7 + $0xf0] sm:$0xff]
    %v197 = vld [vmem:[#allocation7 + $0xf8] sm:$0xf]
    %v198 = vld [vmem:[#allocation7 + $0xfc] sm:$0xff]
    %v199 = vld [vmem:[#allocation7 + $0x104] sm:$0xff]
    %v200 = vld [vmem:[#allocation7 + $0x10c] sm:$0xff]
    %v201 = vld [vmem:[#allocation7 + $0x114] sm:$0xff]
    %v202 = vld [vmem:[#allocation7 + $0x11c] sm:$0xf]
    %v203 = vld [vmem:[#allocation7 + $0x120] sm:$0xff]
    %v204 = vld [vmem:[#allocation7 + $0x128] sm:$0xff]
    %v205 = vld [vmem:[#allocation7 + $0x130] sm:$0xff]
    %v206 = vld [vmem:[#allocation7 + $0x138] sm:$0xff]
    %v207 = vld [vmem:[#allocation7 + $0x140] sm:$0xf]
    %v208 = vld [vmem:[#allocation7 + $0x144] sm:$0xff]
    %v209 = vld [vmem:[#allocation7 + $0x14c] sm:$0xff]
    %v210 = vld [vmem:[#allocation7 + $0x154] sm:$0xff]
    %v211 = vld [vmem:[#allocation7 + $0x15c] sm:$0xff]
    %v212 = vld [vmem:[#allocation7 + $0x164] sm:$0xf]
    %v213 = vld [vmem:[#allocation7 + $0x168] sm:$0xff]
    %v214 = vld [vmem:[#allocation7 + $0x170] sm:$0xff]
    %v215 = vld [vmem:[#allocation7 + $0x178] sm:$0xff]
    %v216 = vld [vmem:[#allocation7 + $0x180] sm:$0xff]
    %v217 = vld [vmem:[#allocation7 + $0x188] sm:$0xf]
    %v218 = vld [vmem:[#allocation7 + $0x18c] sm:$0xff]
    %v219 = vld [vmem:[#allocation7 + $0x194] sm:$0xff]
    %v220 = vld [vmem:[#allocation7 + $0x19c] sm:$0xff]
    %v221 = vld [vmem:[#allocation7 + $0x1a4] sm:$0xff]
    %v222 = vld [vmem:[#allocation7 + $0x1ac] sm:$0xf]
    %v223 = vld [vmem:[#allocation7 + $0x1b0] sm:$0xff]
    %v224 = vld [vmem:[#allocation7 + $0x1b8] sm:$0xff]
    %v225 = vld [vmem:[#allocation7 + $0x1c0] sm:$0xff]
    %v226 = vld [vmem:[#allocation7 + $0x1c8] sm:$0xff]
    %v227 = vld [vmem:[#allocation7 + $0x1d0] sm:$0xf]
    %v228 = vld [vmem:[#allocation7 + $0x1d4] sm:$0xff]
    %v229 = vld [vmem:[#allocation7 + $0x1dc] sm:$0xff]
    %v230 = vld [vmem:[#allocation7 + $0x1e4] sm:$0xff]
    %v231 = vld [vmem:[#allocation7 + $0x1ec] sm:$0xff]
    %v232 = vld [vmem:[#allocation7 + $0x1f4] sm:$0xf]
    %v233 = vld [vmem:[#allocation7 + $0x1f8] sm:$0xff]
    %v234 = vld [vmem:[#allocation7 + $0x200] sm:$0xff]
    %v235 = vld [vmem:[#allocation7 + $0x208] sm:$0xff]
    %v236 = vld [vmem:[#allocation7 + $0x210] sm:$0xff]
    %v237 = vld [vmem:[#allocation7 + $0x218] sm:$0xf]
    %v238 = vld [vmem:[#allocation7 + $0x21c] sm:$0xff]
    %v239 = vld [vmem:[#allocation7 + $0x224] sm:$0xff]
    %v240 = vld [vmem:[#allocation7 + $0x22c] sm:$0xff]
    %v241 = vld [vmem:[#allocation7 + $0x234] sm:$0xff]
    %v242 = vld [vmem:[#allocation7 + $0x23c] sm:$0xf]
    %v323 = vunpack.c.l.b16 %v163
    %v324 = vunpack.c.h.b16 %v163
    %v325 = vunpack.c.l.b16 %v164
    %v326 = vunpack.c.h.b16 %v164
    %v327 = vunpack.c.l.b16 %v165
    %v328 = vunpack.c.h.b16 %v165
    %v329 = vunpack.c.l.b16 %v166
    %v330 = vunpack.c.h.b16 %v166
    %v331 = vunpack.c.l.b16 %v167
    %v332 = vunpack.c.l.b16 %v168
    %v333 = vunpack.c.h.b16 %v168
    %v334 = vunpack.c.l.b16 %v169
    %v335 = vunpack.c.h.b16 %v169
    %v336 = vunpack.c.l.b16 %v170
    %v337 = vunpack.c.h.b16 %v170
    %v338 = vunpack.c.l.b16 %v171
    %v339 = vunpack.c.h.b16 %v171
    %v340 = vunpack.c.l.b16 %v172
    %v341 = vunpack.c.l.b16 %v173
    %v342 = vunpack.c.h.b16 %v173
    %v343 = vunpack.c.l.b16 %v174
    %v344 = vunpack.c.h.b16 %v174
    %v345 = vunpack.c.l.b16 %v175
    %v346 = vunpack.c.h.b16 %v175
    %v347 = vunpack.c.l.b16 %v176
    %v348 = vunpack.c.h.b16 %v176
    %v349 = vunpack.c.l.b16 %v177
    %v350 = vunpack.c.l.b16 %v178
    %v351 = vunpack.c.h.b16 %v178
    %v352 = vunpack.c.l.b16 %v179
    %v353 = vunpack.c.h.b16 %v179
    %v354 = vunpack.c.l.b16 %v180
    %v355 = vunpack.c.h.b16 %v180
    %v356 = vunpack.c.l.b16 %v181
    %v357 = vunpack.c.h.b16 %v181
    %v358 = vunpack.c.l.b16 %v182
    %v359 = vunpack.c.l.b16 %v183
    %v360 = vunpack.c.h.b16 %v183
    %v361 = vunpack.c.l.b16 %v184
    %v362 = vunpack.c.h.b16 %v184
    %v363 = vunpack.c.l.b16 %v185
    %v364 = vunpack.c.h.b16 %v185
    %v365 = vunpack.c.l.b16 %v186
    %v366 = vunpack.c.h.b16 %v186
    %v367 = vunpack.c.l.b16 %v187
    %v368 = vunpack.c.l.b16 %v188
    %v369 = vunpack.c.h.b16 %v188
    %v370 = vunpack.c.l.b16 %v189
    %v371 = vunpack.c.h.b16 %v189
    %v372 = vunpack.c.l.b16 %v190
    %v373 = vunpack.c.h.b16 %v190
    %v374 = vunpack.c.l.b16 %v191
    %v375 = vunpack.c.h.b16 %v191
    %v376 = vunpack.c.l.b16 %v192
    %v377 = vunpack.c.l.b16 %v193
    %v378 = vunpack.c.h.b16 %v193
    %v379 = vunpack.c.l.b16 %v194
    %v380 = vunpack.c.h.b16 %v194
    %v381 = vunpack.c.l.b16 %v195
    %v382 = vunpack.c.h.b16 %v195
    %v383 = vunpack.c.l.b16 %v196
    %v384 = vunpack.c.h.b16 %v196
    %v385 = vunpack.c.l.b16 %v197
    %v386 = vunpack.c.l.b16 %v198
    %v387 = vunpack.c.h.b16 %v198
    %v388 = vunpack.c.l.b16 %v199
    %v389 = vunpack.c.h.b16 %v199
    %v390 = vunpack.c.l.b16 %v200
    %v391 = vunpack.c.h.b16 %v200
    %v392 = vunpack.c.l.b16 %v201
    %v393 = vunpack.c.h.b16 %v201
    %v394 = vunpack.c.l.b16 %v202
    %v395 = vunpack.c.l.b16 %v203
    %v396 = vunpack.c.h.b16 %v203
    %v397 = vunpack.c.l.b16 %v204
    %v398 = vunpack.c.h.b16 %v204
    %v399 = vunpack.c.l.b16 %v205
    %v400 = vunpack.c.h.b16 %v205
    %v401 = vunpack.c.l.b16 %v206
    %v402 = vunpack.c.h.b16 %v206
    %v403 = vunpack.c.l.b16 %v207
    %v404 = vunpack.c.l.b16 %v208
    %v405 = vunpack.c.h.b16 %v208
    %v406 = vunpack.c.l.b16 %v209
    %v407 = vunpack.c.h.b16 %v209
    %v408 = vunpack.c.l.b16 %v210
    %v409 = vunpack.c.h.b16 %v210
    %v410 = vunpack.c.l.b16 %v211
    %v411 = vunpack.c.h.b16 %v211
    %v412 = vunpack.c.l.b16 %v212
    %v413 = vunpack.c.l.b16 %v213
    %v414 = vunpack.c.h.b16 %v213
    %v415 = vunpack.c.l.b16 %v214
    %v416 = vunpack.c.h.b16 %v214
    %v417 = vunpack.c.l.b16 %v215
    %v418 = vunpack.c.h.b16 %v215
    %v419 = vunpack.c.l.b16 %v216
    %v420 = vunpack.c.h.b16 %v216
    %v421 = vunpack.c.l.b16 %v217
    %v422 = vunpack.c.l.b16 %v218
    %v423 = vunpack.c.h.b16 %v218
    %v424 = vunpack.c.l.b16 %v219
    %v425 = vunpack.c.h.b16 %v219
    %v426 = vunpack.c.l.b16 %v220
    %v427 = vunpack.c.h.b16 %v220
    %v428 = vunpack.c.l.b16 %v221
    %v429 = vunpack.c.h.b16 %v221
    %v430 = vunpack.c.l.b16 %v222
    %v431 = vunpack.c.l.b16 %v223
    %v432 = vunpack.c.h.b16 %v223
    %v433 = vunpack.c.l.b16 %v224
    %v434 = vunpack.c.h.b16 %v224
    %v435 = vunpack.c.l.b16 %v225
    %v436 = vunpack.c.h.b16 %v225
    %v437 = vunpack.c.l.b16 %v226
    %v438 = vunpack.c.h.b16 %v226
    %v439 = vunpack.c.l.b16 %v227
    %v440 = vunpack.c.l.b16 %v228
    %v441 = vunpack.c.h.b16 %v228
    %v442 = vunpack.c.l.b16 %v229
    %v443 = vunpack.c.h.b16 %v229
    %v444 = vunpack.c.l.b16 %v230
    %v445 = vunpack.c.h.b16 %v230
    %v446 = vunpack.c.l.b16 %v231
    %v447 = vunpack.c.h.b16 %v231
    %v448 = vunpack.c.l.b16 %v232
    %v449 = vunpack.c.l.b16 %v233
    %v450 = vunpack.c.h.b16 %v233
    %v451 = vunpack.c.l.b16 %v234
    %v452 = vunpack.c.h.b16 %v234
    %v453 = vunpack.c.l.b16 %v235
    %v454 = vunpack.c.h.b16 %v235
    %v455 = vunpack.c.l.b16 %v236
    %v456 = vunpack.c.h.b16 %v236
    %v457 = vunpack.c.l.b16 %v237
    %v458 = vunpack.c.l.b16 %v238
    %v459 = vunpack.c.h.b16 %v238
    %v460 = vunpack.c.l.b16 %v239
    %v461 = vunpack.c.h.b16 %v239
    %v462 = vunpack.c.l.b16 %v240
    %v463 = vunpack.c.h.b16 %v240
    %v464 = vunpack.c.l.b16 %v241
    %v465 = vunpack.c.h.b16 %v241
    %v466 = vunpack.c.l.b16 %v242
    %v467 = vpack.c.b16 %v332, %v323
    %v468 = vpack.c.b16 %v333, %v324
    %v469 = vpack.c.b16 %v334, %v325
    %v470 = vpack.c.b16 %v335, %v326
    %v471 = vpack.c.b16 %v336, %v327
    %v472 = vpack.c.b16 %v337, %v328
    %v473 = vpack.c.b16 %v338, %v329
    %v474 = vpack.c.b16 %v339, %v330
    %v475 = vpack.c.b16 %v340, %v331
    %v476 = vpack.c.b16 %v350, %v341
    %v477 = vpack.c.b16 %v351, %v342
    %v478 = vpack.c.b16 %v352, %v343
    %v479 = vpack.c.b16 %v353, %v344
    %v480 = vpack.c.b16 %v354, %v345
    %v481 = vpack.c.b16 %v355, %v346
    %v482 = vpack.c.b16 %v356, %v347
    %v483 = vpack.c.b16 %v357, %v348
    %v484 = vpack.c.b16 %v358, %v349
    %v485 = vpack.c.b16 %v368, %v359
    %v486 = vpack.c.b16 %v369, %v360
    %v487 = vpack.c.b16 %v370, %v361
    %v488 = vpack.c.b16 %v371, %v362
    %v489 = vpack.c.b16 %v372, %v363
    %v490 = vpack.c.b16 %v373, %v364
    %v491 = vpack.c.b16 %v374, %v365
    %v492 = vpack.c.b16 %v375, %v366
    %v493 = vpack.c.b16 %v376, %v367
    %v494 = vpack.c.b16 %v386, %v377
    %v495 = vpack.c.b16 %v387, %v378
    %v496 = vpack.c.b16 %v388, %v379
    %v497 = vpack.c.b16 %v389, %v380
    %v498 = vpack.c.b16 %v390, %v381
    %v499 = vpack.c.b16 %v391, %v382
    %v500 = vpack.c.b16 %v392, %v383
    %v501 = vpack.c.b16 %v393, %v384
    %v502 = vpack.c.b16 %v394, %v385
    %v503 = vpack.c.b16 %v404, %v395
    %v504 = vpack.c.b16 %v405, %v396
    %v505 = vpack.c.b16 %v406, %v397
    %v506 = vpack.c.b16 %v407, %v398
    %v507 = vpack.c.b16 %v408, %v399
    %v508 = vpack.c.b16 %v409, %v400
    %v509 = vpack.c.b16 %v410, %v401
    %v510 = vpack.c.b16 %v411, %v402
    %v511 = vpack.c.b16 %v412, %v403
    %v512 = vpack.c.b16 %v422, %v413
    %v513 = vpack.c.b16 %v423, %v414
    %v514 = vpack.c.b16 %v424, %v415
    %v515 = vpack.c.b16 %v425, %v416
    %v516 = vpack.c.b16 %v426, %v417
    %v517 = vpack.c.b16 %v427, %v418
    %v518 = vpack.c.b16 %v428, %v419
    %v519 = vpack.c.b16 %v429, %v420
    %v520 = vpack.c.b16 %v430, %v421
    %v521 = vpack.c.b16 %v440, %v431
    %v522 = vpack.c.b16 %v441, %v432
    %v523 = vpack.c.b16 %v442, %v433
    %v524 = vpack.c.b16 %v443, %v434
    %v525 = vpack.c.b16 %v444, %v435
    %v526 = vpack.c.b16 %v445, %v436
    %v527 = vpack.c.b16 %v446, %v437
    %v528 = vpack.c.b16 %v447, %v438
    %v529 = vpack.c.b16 %v448, %v439
    %v530 = vpack.c.b16 %v458, %v449
    %v531 = vpack.c.b16 %v459, %v450
    %v532 = vpack.c.b16 %v460, %v451
    %v533 = vpack.c.b16 %v461, %v452
    %v534 = vpack.c.b16 %v462, %v453
    %v535 = vpack.c.b16 %v463, %v454
    %v536 = vpack.c.b16 %v464, %v455
    %v537 = vpack.c.b16 %v465, %v456
    %v538 = vpack.c.b16 %v466, %v457
    %611 = vmatprep.subr.bf16.mxu0 %v468
    %612 = vmatpush1.bf16.msra.mxu0 %v467
    %613 = vmatprep.subr.bf16.mxu0 %v477
    %614 = vmatpush1.bf16.msra.mxu0 %v476
    %615 = vmatprep.subr.bf16.mxu0 %v486
    %616 = vmatpush1.bf16.msra.mxu0 %v485
    %617 = vmatprep.subr.bf16.mxu0 %v495
    %618 = vmatpush1.bf16.msra.mxu0 %v494
    %619 = vmatprep.subr.bf16.mxu0 %v504
    %620 = vmatpush1.bf16.msra.mxu0 %v503
    %621 = vmatprep.subr.bf16.mxu0 %v513
    %622 = vmatpush1.bf16.msra.mxu0 %v512
    %623 = vmatprep.subr.bf16.mxu0 %v522
    %624 = vmatpush1.bf16.msra.mxu0 %v521
    %625 = vmatprep.subr.bf16.mxu0 %v531
    %626 = vmatpush1.bf16.msra.mxu0 %v530
    %627 = vmatprep.subr.bf16.mxu0 0
    %628 = vmatpush1.bf16.msra.mxu0 0
    %629 = vmatprep.subr.bf16.mxu0 0
    %630 = vmatpush1.bf16.msra.mxu0 0
    %631 = vmatprep.subr.bf16.mxu0 0
    %632 = vmatpush1.bf16.msra.mxu0 0
    %633 = vmatprep.subr.bf16.mxu0 0
    %634 = vmatpush1.bf16.msra.mxu0 0
    %635 = vmatprep.subr.bf16.mxu0 0
    %636 = vmatpush1.bf16.msra.mxu0 0
    %637 = vmatprep.subr.bf16.mxu0 0
    %638 = vmatpush1.bf16.msra.mxu0 0
    %639 = vmatprep.subr.bf16.mxu0 0
    %640 = vmatpush1.bf16.msra.mxu0 0
    %641 = vmatprep.subr.bf16.mxu0 0
    %642 = vmatpush1.bf16.msra.mxu0 0
    %643 = vmatprep.mubr.bf16.mxu0 0
    %644 = vmatmul.mubr.bf16.gmra.mrb[0].mxu0 %v162
    %v645 = vpop.f32.mrb[0].mxu0
    %v646 = vadd.f32 0.0, %v645
    %v647 = vpop.f32.mrb[0].mxu0
    %v648 = vadd.f32 0.0, %v647
    %v649 = vpop.f32.mrb[0].mxu0
    %v650 = vadd.f32 0.0, %v649
    %v651 = vpop.f32.mrb[0].mxu0
    %v652 = vadd.f32 0.0, %v651
    %653 = vdwg.mxu0
    %654 = vmatprep.subr.bf16.mxu0 %v470
    %655 = vmatpush1.bf16.msra.mxu0 %v469
    %656 = vmatprep.subr.bf16.mxu0 %v479
    %657 = vmatpush1.bf16.msra.mxu0 %v478
    %658 = vmatprep.subr.bf16.mxu0 %v488
    %659 = vmatpush1.bf16.msra.mxu0 %v487
    %660 = vmatprep.subr.bf16.mxu0 %v497
    %661 = vmatpush1.bf16.msra.mxu0 %v496
    %662 = vmatprep.subr.bf16.mxu0 %v506
    %663 = vmatpush1.bf16.msra.mxu0 %v505
    %664 = vmatprep.subr.bf16.mxu0 %v515
    %665 = vmatpush1.bf16.msra.mxu0 %v514
    %666 = vmatprep.subr.bf16.mxu0 %v524
    %667 = vmatpush1.bf16.msra.mxu0 %v523
    %668 = vmatprep.subr.bf16.mxu0 %v533
    %669 = vmatpush1.bf16.msra.mxu0 %v532
    %670 = vmatprep.subr.bf16.mxu0 0
    %671 = vmatpush1.bf16.msra.mxu0 0
    %672 = vmatprep.subr.bf16.mxu0 0
    %673 = vmatpush1.bf16.msra.mxu0 0
    %674 = vmatprep.subr.bf16.mxu0 0
    %675 = vmatpush1.bf16.msra.mxu0 0
    %676 = vmatprep.subr.bf16.mxu0 0
    %677 = vmatpush1.bf16.msra.mxu0 0
    %678 = vmatprep.subr.bf16.mxu0 0
    %679 = vmatpush1.bf16.msra.mxu0 0
    %680 = vmatprep.subr.bf16.mxu0 0
    %681 = vmatpush1.bf16.msra.mxu0 0
    %682 = vmatprep.subr.bf16.mxu0 0
    %683 = vmatpush1.bf16.msra.mxu0 0
    %684 = vmatprep.subr.bf16.mxu0 0
    %685 = vmatpush1.bf16.msra.mxu0 0
    %686 = vmatprep.mubr.bf16.mxu0 0
    %687 = vmatmul.mubr.bf16.gmra.mrb[0].mxu0 %v162
    %v688 = vpop.f32.mrb[0].mxu0
    %v689 = vadd.f32 0.0, %v688
    %v690 = vpop.f32.mrb[0].mxu0
    %v691 = vadd.f32 0.0, %v690
    %v692 = vpop.f32.mrb[0].mxu0
    %v693 = vadd.f32 0.0, %v692
    %v694 = vpop.f32.mrb[0].mxu0
    %v695 = vadd.f32 0.0, %v694
    %696 = vdwg.mxu0
    %697 = vmatprep.subr.bf16.mxu0 %v472
    %698 = vmatpush1.bf16.msra.mxu0 %v471
    %699 = vmatprep.subr.bf16.mxu0 %v481
    %700 = vmatpush1.bf16.msra.mxu0 %v480
    %701 = vmatprep.subr.bf16.mxu0 %v490
    %702 = vmatpush1.bf16.msra.mxu0 %v489
    %703 = vmatprep.subr.bf16.mxu0 %v499
    %704 = vmatpush1.bf16.msra.mxu0 %v498
    %705 = vmatprep.subr.bf16.mxu0 %v508
    %706 = vmatpush1.bf16.msra.mxu0 %v507
    %707 = vmatprep.subr.bf16.mxu0 %v517
    %708 = vmatpush1.bf16.msra.mxu0 %v516
    %709 = vmatprep.subr.bf16.mxu0 %v526
    %710 = vmatpush1.bf16.msra.mxu0 %v525
    %711 = vmatprep.subr.bf16.mxu0 %v535
    %712 = vmatpush1.bf16.msra.mxu0 %v534
    %713 = vmatprep.subr.bf16.mxu0 0
    %714 = vmatpush1.bf16.msra.mxu0 0
    %715 = vmatprep.subr.bf16.mxu0 0
    %716 = vmatpush1.bf16.msra.mxu0 0
    %717 = vmatprep.subr.bf16.mxu0 0
    %718 = vmatpush1.bf16.msra.mxu0 0
    %719 = vmatprep.subr.bf16.mxu0 0
    %720 = vmatpush1.bf16.msra.mxu0 0
    %721 = vmatprep.subr.bf16.mxu0 0
    %722 = vmatpush1.bf16.msra.mxu0 0
    %723 = vmatprep.subr.bf16.mxu0 0
    %724 = vmatpush1.bf16.msra.mxu0 0
    %725 = vmatprep.subr.bf16.mxu0 0
    %726 = vmatpush1.bf16.msra.mxu0 0
    %727 = vmatprep.subr.bf16.mxu0 0
    %728 = vmatpush1.bf16.msra.mxu0 0
    %729 = vmatprep.mubr.bf16.mxu0 0
    %730 = vmatmul.mubr.bf16.gmra.mrb[0].mxu0 %v162
    %v731 = vpop.f32.mrb[0].mxu0
    %v732 = vadd.f32 0.0, %v731
    %v733 = vpop.f32.mrb[0].mxu0
    %v734 = vadd.f32 0.0, %v733
    %v735 = vpop.f32.mrb[0].mxu0
    %v736 = vadd.f32 0.0, %v735
    %v737 = vpop.f32.mrb[0].mxu0
    %v738 = vadd.f32 0.0, %v737
    %739 = vdwg.mxu0
    %740 = vmatprep.subr.bf16.mxu0 %v474
    %741 = vmatpush1.bf16.msra.mxu0 %v473
    %742 = vmatprep.subr.bf16.mxu0 %v483
    %743 = vmatpush1.bf16.msra.mxu0 %v482
    %744 = vmatprep.subr.bf16.mxu0 %v492
    %745 = vmatpush1.bf16.msra.mxu0 %v491
    %746 = vmatprep.subr.bf16.mxu0 %v501
    %747 = vmatpush1.bf16.msra.mxu0 %v500
    %748 = vmatprep.subr.bf16.mxu0 %v510
    %749 = vmatpush1.bf16.msra.mxu0 %v509
    %750 = vmatprep.subr.bf16.mxu0 %v519
    %751 = vmatpush1.bf16.msra.mxu0 %v518
    %752 = vmatprep.subr.bf16.mxu0 %v528
    %753 = vmatpush1.bf16.msra.mxu0 %v527
    %754 = vmatprep.subr.bf16.mxu0 %v537
    %755 = vmatpush1.bf16.msra.mxu0 %v536
    %756 = vmatprep.subr.bf16.mxu0 0
    %757 = vmatpush1.bf16.msra.mxu0 0
    %758 = vmatprep.subr.bf16.mxu0 0
    %759 = vmatpush1.bf16.msra.mxu0 0
    %760 = vmatprep.subr.bf16.mxu0 0
    %761 = vmatpush1.bf16.msra.mxu0 0
    %762 = vmatprep.subr.bf16.mxu0 0
    %763 = vmatpush1.bf16.msra.mxu0 0
    %764 = vmatprep.subr.bf16.mxu0 0
    %765 = vmatpush1.bf16.msra.mxu0 0
    %766 = vmatprep.subr.bf16.mxu0 0
    %767 = vmatpush1.bf16.msra.mxu0 0
    %768 = vmatprep.subr.bf16.mxu0 0
    %769 = vmatpush1.bf16.msra.mxu0 0
    %770 = vmatprep.subr.bf16.mxu0 0
    %771 = vmatpush1.bf16.msra.mxu0 0
    %772 = vmatprep.mubr.bf16.mxu0 0
    %773 = vmatmul.mubr.bf16.gmra.mrb[0].mxu0 %v162
    %v774 = vpop.f32.mrb[0].mxu0
    %v775 = vadd.f32 0.0, %v774
    %v776 = vpop.f32.mrb[0].mxu0
    %v777 = vadd.f32 0.0, %v776
    %v778 = vpop.f32.mrb[0].mxu0
    %v779 = vadd.f32 0.0, %v778
    %v780 = vpop.f32.mrb[0].mxu0
    %v781 = vadd.f32 0.0, %v780
    %782 = vdwg.mxu0
    %783 = vmatprep.subr.bf16.mxu0 0
    %784 = vmatpush1.bf16.msra.mxu0 %v475
    %785 = vmatprep.subr.bf16.mxu0 0
    %786 = vmatpush1.bf16.msra.mxu0 %v484
    %787 = vmatprep.subr.bf16.mxu0 0
    %788 = vmatpush1.bf16.msra.mxu0 %v493
    %789 = vmatprep.subr.bf16.mxu0 0
    %790 = vmatpush1.bf16.msra.mxu0 %v502
    %791 = vmatprep.subr.bf16.mxu0 0
    %792 = vmatpush1.bf16.msra.mxu0 %v511
    %793 = vmatprep.subr.bf16.mxu0 0
    %794 = vmatpush1.bf16.msra.mxu0 %v520
    %795 = vmatprep.subr.bf16.mxu0 0
    %796 = vmatpush1.bf16.msra.mxu0 %v529
    %797 = vmatprep.subr.bf16.mxu0 0
    %798 = vmatpush1.bf16.msra.mxu0 %v538
    %799 = vmatprep.subr.bf16.mxu0 0
    %800 = vmatpush1.bf16.msra.mxu0 0
    %801 = vmatprep.subr.bf16.mxu0 0
    %802 = vmatpush1.bf16.msra.mxu0 0
    %803 = vmatprep.subr.bf16.mxu0 0
    %804 = vmatpush1.bf16.msra.mxu0 0
    %805 = vmatprep.subr.bf16.mxu0 0
    %806 = vmatpush1.bf16.msra.mxu0 0
    %807 = vmatprep.subr.bf16.mxu0 0
    %808 = vmatpush1.bf16.msra.mxu0 0
    %809 = vmatprep.subr.bf16.mxu0 0
    %810 = vmatpush1.bf16.msra.mxu0 0
    %811 = vmatprep.subr.bf16.mxu0 0
    %812 = vmatpush1.bf16.msra.mxu0 0
    %813 = vmatprep.subr.bf16.mxu0 0
    %814 = vmatpush1.bf16.msra.mxu0 0
    %815 = vmatprep.mubr.bf16.mxu0 0
    %816 = vmatmul.mubr.bf16.gmra.mrb[0].mxu0 %v162
    %v817 = vpop.f32.mrb[0].mxu0
    %v818 = vadd.f32 0.0, %v817
    %v819 = vpop.f32.mrb[0].mxu0
    %v820 = vpop.f32.mrb[0].mxu0
    %v821 = vadd.f32 0.0, %v820
    %v822 = vpop.f32.mrb[0].mxu0
    %823 = vdwg.mxu0
    %v824 = vld [vmem:[#allocation9] sm:$0xf]
    %v826 = vlaneseq
    %v827 = vshrl.u32 %v826, 7
    %v828 = vsub.s32 0, %v827
    %v829 = vrot.slane %v824, %v828
    %v830 = vlaneseq
    %v831 = vshrl.u32 %v830, 7
    %v832 = vsub.s32 1, %v831
    %v833 = vrot.slane %v824, %v832
    %v834 = vlaneseq
    %v835 = vshrl.u32 %v834, 7
    %v836 = vsub.s32 2, %v835
    %v837 = vrot.slane %v824, %v836
    %v838 = vlaneseq
    %v839 = vshrl.u32 %v838, 7
    %v840 = vsub.s32 3, %v839
    %v841 = vrot.slane %v824, %v840
    %v846 = vadd.f32 %v691, %v829
    %v847 = vadd.f32 %v732, %v833
    %v848 = vadd.f32 %v734, %v837
    %v849 = vadd.f32 %v775, %v841
    %v850 = vadd.f32 %v695, %v829
    %v851 = vadd.f32 %v736, %v833
    %v852 = vadd.f32 %v738, %v837
    %v853 = vadd.f32 %v779, %v841
    %v854 = vld [vmem:[#allocation12] sm:$0xff]
    %v855 = vld [vmem:[#allocation12 + $0x8] sm:$0xff]
    %v856 = vld [vmem:[%s9] sm:$0xff]
    %v857 = vld [vmem:[%s9 + $0x8] sm:$0xff]
    %v858 = vmul.f32 %v646, %v854
    %v859 = vmul.f32 %v650, %v855
    %v860 = vmul.f32 %v777, %v856
    %v861 = vmul.f32 %v781, %v857
    %v862 = vadd.f32 %v858, %v860
    %v863 = vadd.f32 %v859, %v861
    %v864 = vmul.f32 %v648, %v854
    %v865 = vmul.f32 %v652, %v855
    %v866 = vmul.f32 %v818, %v856
    %v867 = vmul.f32 %v821, %v857
    %v868 = vadd.f32 %v864, %v866
    %v869 = vadd.f32 %v865, %v867
    %v870 = vmul.f32 %v846, 0.5
    %v871 = vmul.f32 %v847, 0.5
    %v872 = vmul.f32 %v848, 0.5
    %v873 = vmul.f32 %v849, 0.5
    %v874 = vmul.f32 %v850, 0.5
    %v875 = vmul.f32 %v851, 0.5
    %v876 = vmul.f32 %v852, 0.5
    %v877 = vmul.f32 %v853, 0.5
    %v878 = vmul.f32 %v846, 0.044715
    %v879 = vmul.f32 %v847, 0.044715
    %v880 = vmul.f32 %v848, 0.044715
    %v881 = vmul.f32 %v849, 0.044715
    %v882 = vmul.f32 %v850, 0.044715
    %v883 = vmul.f32 %v851, 0.044715
    %v884 = vmul.f32 %v852, 0.044715
    %v885 = vmul.f32 %v853, 0.044715
    %v886 = vmul.f32 %v878, %v846
    %v887 = vmul.f32 %v879, %v847
    %v888 = vmul.f32 %v880, %v848
    %v889 = vmul.f32 %v881, %v849
    %v890 = vmul.f32 %v882, %v850
    %v891 = vmul.f32 %v883, %v851
    %v892 = vmul.f32 %v884, %v852
    %v893 = vmul.f32 %v885, %v853
    %v894 = vmul.f32 %v886, %v846
    %v895 = vmul.f32 %v887, %v847
    %v896 = vmul.f32 %v888, %v848
    %v897 = vmul.f32 %v889, %v849
    %v898 = vmul.f32 %v890, %v850
    %v899 = vmul.f32 %v891, %v851
    %v900 = vmul.f32 %v892, %v852
    %v901 = vmul.f32 %v893, %v853
    %v902 = vadd.f32 %v846, %v894
    %v903 = vadd.f32 %v847, %v895
    %v904 = vadd.f32 %v848, %v896
    %v905 = vadd.f32 %v849, %v897
    %v906 = vadd.f32 %v850, %v898
    %v907 = vadd.f32 %v851, %v899
    %v908 = vadd.f32 %v852, %v900
    %v909 = vadd.f32 %v853, %v901
    %v910 = vmul.f32 %v902, 0.7978846
    %v911 = vmul.f32 %v903, 0.7978846
    %v912 = vmul.f32 %v904, 0.7978846
    %v913 = vmul.f32 %v905, 0.7978846
    %v914 = vmul.f32 %v906, 0.7978846
    %v915 = vmul.f32 %v907, 0.7978846
    %v916 = vmul.f32 %v908, 0.7978846
    %v917 = vmul.f32 %v909, 0.7978846
    %v918 = vtanh.pop %v910
    %v919 = vtanh.pop %v911
    %v920 = vtanh.pop %v912
    %v921 = vtanh.pop %v913
    %v922 = vtanh.pop %v914
    %v923 = vtanh.pop %v915
    %v924 = vtanh.pop %v916
    %v925 = vtanh.pop %v917
    %v926 = vadd.f32 %v918, 1.0
    %v927 = vadd.f32 %v919, 1.0
    %v928 = vadd.f32 %v920, 1.0
    %v929 = vadd.f32 %v921, 1.0
    %v930 = vadd.f32 %v922, 1.0
    %v931 = vadd.f32 %v923, 1.0
    %v932 = vadd.f32 %v924, 1.0
    %v933 = vadd.f32 %v925, 1.0
    %v934 = vmul.f32 %v870, %v926
    %v935 = vmul.f32 %v871, %v927
    %v936 = vmul.f32 %v872, %v928
    %v937 = vmul.f32 %v873, %v929
    %v938 = vmul.f32 %v874, %v930
    %v939 = vmul.f32 %v875, %v931
    %v940 = vmul.f32 %v876, %v932
    %v941 = vmul.f32 %v877, %v933
    %v942 = vpack.c.bf16 %v938, %v934
    %v943 = vpack.c.bf16 %v939, %v935
    %v944 = vpack.c.bf16 %v940, %v936
    %v945 = vpack.c.bf16 %v941, %v937
    %v946 = vlaneseq
    %v947 = vshrl.u32 %v946, 7
    %v948 = vadd.s32 %v947, 8
    %v949 = vlaneseq
    %v950 = vand.u32 %v949, 127
    %vm951 = vcmp.le.s32.totalorder %v950, %v947
    %vm952 = vcmp.le.s32.totalorder %v950, %v948
    %v953 = vpack.c.bf16 %v863, %v862
    %v954 = vpack.c.bf16 %v869, %v868
    %v955 = vpack.c.bf16 %v693, %v689
    %vm956 = vcmask 261120
    %v958 = vsel %vm956, %v953, 0
    %v961 = vsel %vm956, %v954, 0
    %963 = vmatprep.subr.bf16.mxu0 0
    %964 = vmatpush1.bf16.xpose.msra.mxu0 %v961
    %965 = vmatprep.subr.bf16.mxu0 0
    %966 = vmatpush1.bf16.xpose.msra.mxu0 0
    %967 = vmatprep.subr.bf16.mxu0 0
    %968 = vmatpush1.bf16.xpose.msra.mxu0 0
    %969 = vmatprep.subr.bf16.mxu0 0
    %970 = vmatpush1.bf16.xpose.msra.mxu0 0
    %971 = vmatprep.subr.bf16.mxu0 0
    %972 = vmatpush1.bf16.xpose.msra.mxu0 0
    %973 = vmatprep.subr.bf16.mxu0 0
    %974 = vmatpush1.bf16.xpose.msra.mxu0 0
    %975 = vmatprep.subr.bf16.mxu0 0
    %976 = vmatpush1.bf16.xpose.msra.mxu0 0
    %977 = vmatprep.subr.bf16.mxu0 0
    %978 = vmatpush1.bf16.xpose.msra.mxu0 0
    %979 = vmatprep.subr.bf16.mxu0 0
    %980 = vmatpush1.bf16.xpose.msra.mxu0 0
    %981 = vmatprep.subr.bf16.mxu0 0
    %982 = vmatpush1.bf16.xpose.msra.mxu0 0
    %983 = vmatprep.subr.bf16.mxu0 0
    %984 = vmatpush1.bf16.xpose.msra.mxu0 0
    %985 = vmatprep.subr.bf16.mxu0 0
    %986 = vmatpush1.bf16.xpose.msra.mxu0 0
    %987 = vmatprep.subr.bf16.mxu0 0
    %988 = vmatpush1.bf16.xpose.msra.mxu0 0
    %989 = vmatprep.subr.bf16.mxu0 0
    %990 = vmatpush1.bf16.xpose.msra.mxu0 0
    %991 = vmatprep.subr.bf16.mxu0 0
    %992 = vmatpush1.bf16.xpose.msra.mxu0 0
    %993 = vmatprep.subr.bf16.mxu0 0
    %994 = vmatpush1.bf16.xpose.msra.mxu0 0
    %995 = vmatprep.mubr.bf16.mxu0 0
    %996 = vmatmul.mubr.bf16.gmra.mrb[0].mxu0 %v958
    %v997 = vpop.f32.mrb[0].mxu0
    %v998 = vadd.f32 0.0, %v997
    %v999 = vpop.f32.mrb[0].mxu0
    %v1000 = vpop.f32.mrb[0].mxu0
    %v1001 = vadd.f32 0.0, %v1000
    %v1002 = vpop.f32.mrb[0].mxu0
    %1003 = vdwg.mxu0
    %v1004 = vmul.f32 %v998, 0.17677669
    %v1005 = vmul.f32 %v1001, 0.17677669
    %v1006 = vsel %vm951, %v1004, -1e+30
    %v1007 = vsel %vm952, %v1005, -1e+30
    %vm1008 = vcmask 130048
    %v1009 = vsel %vm1008, %v1006, -inf
    %1010 = vmax.xlane.f32.xlu0 %v1009
    %v1011 = vpop.xlane.xlu0 %1010
    %v1012 = vsel %vm1008, %v1007, -inf
    %1013 = vmax.xlane.f32.xlu0 %v1012
    %v1014 = vpop.xlane.xlu0 %1013
    %v1015 = vsub.f32 %v1006, %v1011
    %v1016 = vsub.f32 %v1007, %v1014
    %v1017 = vmul.f32 %v1015, 1.442695
    %v1018 = vpow.pop %v1017
    %v1019 = vmul.f32 %v1016, 1.442695
    %v1020 = vpow.pop %v1019
    %v1021 = vsel %vm1008, %v1018, 0.0
    %1022 = vadd.xlane.f32.xlu0 %v1021
    %v1023 = vpop.xlane.xlu0 %1022
    %v1024 = vsel %vm1008, %v1020, 0.0
    %1025 = vadd.xlane.f32.xlu0 %v1024
    %v1026 = vpop.xlane.xlu0 %1025
    %v1027 = vrcp.pop %v1023
    %v1028 = vmul.f32 %v1018, %v1027
    %v1029 = vrcp.pop %v1026
    %v1030 = vmul.f32 %v1020, %v1029
    %v1031 = vpack.c.bf16 %v1030, %v1028
    %v1033 = vsel %vm1008, %v1031, 0
    %1035 = vmatprep.subr.bf16.mxu0 0
    %1036 = vmatpush1.bf16.msra.mxu0 %v955
    %1037 = vmatprep.subr.bf16.mxu0 0
    %1038 = vmatpush1.bf16.msra.mxu0 0
    %1039 = vmatprep.subr.bf16.mxu0 0
    %1040 = vmatpush1.bf16.msra.mxu0 0
    %1041 = vmatprep.subr.bf16.mxu0 0
    %1042 = vmatpush1.bf16.msra.mxu0 0
    %1043 = vmatprep.subr.bf16.mxu0 0
    %1044 = vmatpush1.bf16.msra.mxu0 0
    %1045 = vmatprep.subr.bf16.mxu0 0
    %1046 = vmatpush1.bf16.msra.mxu0 0
    %1047 = vmatprep.subr.bf16.mxu0 0
    %1048 = vmatpush1.bf16.msra.mxu0 0
    %1049 = vmatprep.subr.bf16.mxu0 0
    %1050 = vmatpush1.bf16.msra.mxu0 0
    %1051 = vmatprep.subr.bf16.mxu0 0
    %1052 = vmatpush1.bf16.msra.mxu0 0
    %1053 = vmatprep.subr.bf16.mxu0 0
    %1054 = vmatpush1.bf16.msra.mxu0 0
    %1055 = vmatprep.subr.bf16.mxu0 0
    %1056 = vmatpush1.bf16.msra.mxu0 0
    %1057 = vmatprep.subr.bf16.mxu0 0
    %1058 = vmatpush1.bf16.msra.mxu0 0
    %1059 = vmatprep.subr.bf16.mxu0 0
    %1060 = vmatpush1.bf16.msra.mxu0 0
    %1061 = vmatprep.subr.bf16.mxu0 0
    %1062 = vmatpush1.bf16.msra.mxu0 0
    %1063 = vmatprep.subr.bf16.mxu0 0
    %1064 = vmatpush1.bf16.msra.mxu0 0
    %1065 = vmatprep.subr.bf16.mxu0 0
    %1066 = vmatpush1.bf16.msra.mxu0 0
    %1067 = vmatprep.mubr.bf16.mxu0 0
    %1068 = vmatmul.mubr.bf16.gmra.mrb[0].mxu0 %v1033
    %v1069 = vpop.f32.mrb[0].mxu0
    %v1070 = vadd.f32 0.0, %v1069
    %v1071 = vpop.f32.mrb[0].mxu0
    %v1072 = vpop.f32.mrb[0].mxu0
    %v1073 = vadd.f32 0.0, %v1072
    %v1074 = vpop.f32.mrb[0].mxu0
    %1075 = vdwg.mxu0
    %1077 = vrot.lane.b32.xlu0 %v953, 96
    %v1078 = vpop.permute.xlu0 %1077
    %1080 = vrot.lane.b32.xlu0 %v954, 96
    %v1081 = vpop.permute.xlu0 %1080
    %v1083 = vsel %vm956, %v1078, 0
    %v1086 = vsel %vm956, %v1081, 0
    %1088 = vmatprep.subr.bf16.mxu0 0
    %1089 = vmatpush1.bf16.xpose.msra.mxu0 %v1086
    %1090 = vmatprep.subr.bf16.mxu0 0
    %1091 = vmatpush1.bf16.xpose.msra.mxu0 0
    %1092 = vmatprep.subr.bf16.mxu0 0
    %1093 = vmatpush1.bf16.xpose.msra.mxu0 0
    %1094 = vmatprep.subr.bf16.mxu0 0
    %1095 = vmatpush1.bf16.xpose.msra.mxu0 0
    %1096 = vmatprep.subr.bf16.mxu0 0
    %1097 = vmatpush1.bf16.xpose.msra.mxu0 0
    %1098 = vmatprep.subr.bf16.mxu0 0
    %1099 = vmatpush1.bf16.xpose.msra.mxu0 0
    %1100 = vmatprep.subr.bf16.mxu0 0
    %1101 = vmatpush1.bf16.xpose.msra.mxu0 0
    %1102 = vmatprep.subr.bf16.mxu0 0
    %1103 = vmatpush1.bf16.xpose.msra.mxu0 0
    %1104 = vmatprep.subr.bf16.mxu0 0
    %1105 = vmatpush1.bf16.xpose.msra.mxu0 0
    %1106 = vmatprep.subr.bf16.mxu0 0
    %1107 = vmatpush1.bf16.xpose.msra.mxu0 0
    %1108 = vmatprep.subr.bf16.mxu0 0
    %1109 = vmatpush1.bf16.xpose.msra.mxu0 0
    %1110 = vmatprep.subr.bf16.mxu0 0
    %1111 = vmatpush1.bf16.xpose.msra.mxu0 0
    %1112 = vmatprep.subr.bf16.mxu0 0
    %1113 = vmatpush1.bf16.xpose.msra.mxu0 0
    %1114 = vmatprep.subr.bf16.mxu0 0
    %1115 = vmatpush1.bf16.xpose.msra.mxu0 0
    %1116 = vmatprep.subr.bf16.mxu0 0
    %1117 = vmatpush1.bf16.xpose.msra.mxu0 0
    %1118 = vmatprep.subr.bf16.mxu0 0
    %1119 = vmatpush1.bf16.xpose.msra.mxu0 0
    %1120 = vmatprep.mubr.bf16.mxu0 0
    %1121 = vmatmul.mubr.bf16.gmra.mrb[0].mxu0 %v1083
    %v1122 = vpop.f32.mrb[0].mxu0
    %v1123 = vadd.f32 0.0, %v1122
    %v1124 = vpop.f32.mrb[0].mxu0
    %v1125 = vpop.f32.mrb[0].mxu0
    %v1126 = vadd.f32 0.0, %v1125
    %v1127 = vpop.f32.mrb[0].mxu0
    %1128 = vdwg.mxu0
    %v1129 = vmul.f32 %v1123, 0.17677669
    %v1130 = vmul.f32 %v1126, 0.17677669
    %v1131 = vsel %vm951, %v1129, -1e+30
    %v1132 = vsel %vm952, %v1130, -1e+30
    %v1133 = vsel %vm1008, %v1131, -inf
    %1134 = vmax.xlane.f32.xlu0 %v1133
    %v1135 = vpop.xlane.xlu0 %1134
    %v1136 = vsel %vm1008, %v1132, -inf
    %1137 = vmax.xlane.f32.xlu0 %v1136
    %v1138 = vpop.xlane.xlu0 %1137
    %v1139 = vsub.f32 %v1131, %v1135
    %v1140 = vsub.f32 %v1132, %v1138
    %v1141 = vmul.f32 %v1139, 1.442695
    %v1142 = vpow.pop %v1141
    %v1143 = vmul.f32 %v1140, 1.442695
    %v1144 = vpow.pop %v1143
    %v1145 = vsel %vm1008, %v1142, 0.0
    %1146 = vadd.xlane.f32.xlu0 %v1145
    %v1147 = vpop.xlane.xlu0 %1146
    %v1148 = vsel %vm1008, %v1144, 0.0
    %1149 = vadd.xlane.f32.xlu0 %v1148
    %v1150 = vpop.xlane.xlu0 %1149
    %v1151 = vrcp.pop %v1147
    %v1152 = vmul.f32 %v1142, %v1151
    %v1153 = vrcp.pop %v1150
    %v1154 = vmul.f32 %v1144, %v1153
    %v1155 = vpack.c.bf16 %v1154, %v1152
    %1157 = vrot.lane.b32.xlu0 %v955, 96
    %v1158 = vpop.permute.xlu0 %1157
    %v1161 = vsel %vm1008, %v1155, 0
    %1163 = vmatprep.subr.bf16.mxu0 0
    %1164 = vmatpush1.bf16.msra.mxu0 %v1158
    %1165 = vmatprep.subr.bf16.mxu0 0
    %1166 = vmatpush1.bf16.msra.mxu0 0
    %1167 = vmatprep.subr.bf16.mxu0 0
    %1168 = vmatpush1.bf16.msra.mxu0 0
    %1169 = vmatprep.subr.bf16.mxu0 0
    %1170 = vmatpush1.bf16.msra.mxu0 0
    %1171 = vmatprep.subr.bf16.mxu0 0
    %1172 = vmatpush1.bf16.msra.mxu0 0
    %1173 = vmatprep.subr.bf16.mxu0 0
    %1174 = vmatpush1.bf16.msra.mxu0 0
    %1175 = vmatprep.subr.bf16.mxu0 0
    %1176 = vmatpush1.bf16.msra.mxu0 0
    %1177 = vmatprep.subr.bf16.mxu0 0
    %1178 = vmatpush1.bf16.msra.mxu0 0
    %1179 = vmatprep.subr.bf16.mxu0 0
    %1180 = vmatpush1.bf16.msra.mxu0 0
    %1181 = vmatprep.subr.bf16.mxu0 0
    %1182 = vmatpush1.bf16.msra.mxu0 0
    %1183 = vmatprep.subr.bf16.mxu0 0
    %1184 = vmatpush1.bf16.msra.mxu0 0
    %1185 = vmatprep.subr.bf16.mxu0 0
    %1186 = vmatpush1.bf16.msra.mxu0 0
    %1187 = vmatprep.subr.bf16.mxu0 0
    %1188 = vmatpush1.bf16.msra.mxu0 0
    %1189 = vmatprep.subr.bf16.mxu0 0
    %1190 = vmatpush1.bf16.msra.mxu0 0
    %1191 = vmatprep.subr.bf16.mxu0 0
    %1192 = vmatpush1.bf16.msra.mxu0 0
    %1193 = vmatprep.subr.bf16.mxu0 0
    %1194 = vmatpush1.bf16.msra.mxu0 0
    %1195 = vmatprep.mubr.bf16.mxu0 0
    %1196 = vmatmul.mubr.bf16.gmra.mrb[0].mxu0 %v1161
    %v1197 = vpop.f32.mrb[0].mxu0
    %v1198 = vadd.f32 0.0, %v1197
    %v1199 = vpop.f32.mrb[0].mxu0
    %v1200 = vpop.f32.mrb[0].mxu0
    %v1201 = vadd.f32 0.0, %v1200
    %v1202 = vpop.f32.mrb[0].mxu0
    %1203 = vdwg.mxu0
    %1204 = vrot.lane.b32.xlu0 %v953, 64
    %v1205 = vpop.permute.xlu0 %1204
    %1206 = vrot.lane.b32.xlu0 %v954, 64
    %v1207 = vpop.permute.xlu0 %1206
    %v1209 = vsel %vm956, %v1205, 0
    %v1212 = vsel %vm956, %v1207, 0
    %1214 = vmatprep.subr.bf16.mxu0 0
    %1215 = vmatpush1.bf16.xpose.msra.mxu0 %v1212
    %1216 = vmatprep.subr.bf16.mxu0 0
    %1217 = vmatpush1.bf16.xpose.msra.mxu0 0
    %1218 = vmatprep.subr.bf16.mxu0 0
    %1219 = vmatpush1.bf16.xpose.msra.mxu0 0
    %1220 = vmatprep.subr.bf16.mxu0 0
    %1221 = vmatpush1.bf16.xpose.msra.mxu0 0
    %1222 = vmatprep.subr.bf16.mxu0 0
    %1223 = vmatpush1.bf16.xpose.msra.mxu0 0
    %1224 = vmatprep.subr.bf16.mxu0 0
    %1225 = vmatpush1.bf16.xpose.msra.mxu0 0
    %1226 = vmatprep.subr.bf16.mxu0 0
    %1227 = vmatpush1.bf16.xpose.msra.mxu0 0
    %1228 = vmatprep.subr.bf16.mxu0 0
    %1229 = vmatpush1.bf16.xpose.msra.mxu0 0
    %1230 = vmatprep.subr.bf16.mxu0 0
    %1231 = vmatpush1.bf16.xpose.msra.mxu0 0
    %1232 = vmatprep.subr.bf16.mxu0 0
    %1233 = vmatpush1.bf16.xpose.msra.mxu0 0
    %1234 = vmatprep.subr.bf16.mxu0 0
    %1235 = vmatpush1.bf16.xpose.msra.mxu0 0
    %1236 = vmatprep.subr.bf16.mxu0 0
    %1237 = vmatpush1.bf16.xpose.msra.mxu0 0
    %1238 = vmatprep.subr.bf16.mxu0 0
    %1239 = vmatpush1.bf16.xpose.msra.mxu0 0
    %1240 = vmatprep.subr.bf16.mxu0 0
    %1241 = vmatpush1.bf16.xpose.msra.mxu0 0
    %1242 = vmatprep.subr.bf16.mxu0 0
    %1243 = vmatpush1.bf16.xpose.msra.mxu0 0
    %1244 = vmatprep.subr.bf16.mxu0 0
    %1245 = vmatpush1.bf16.xpose.msra.mxu0 0
    %1246 = vmatprep.mubr.bf16.mxu0 0
    %1247 = vmatmul.mubr.bf16.gmra.mrb[0].mxu0 %v1209
    %v1248 = vpop.f32.mrb[0].mxu0
    %v1249 = vadd.f32 0.0, %v1248
    %v1250 = vpop.f32.mrb[0].mxu0
    %v1251 = vpop.f32.mrb[0].mxu0
    %v1252 = vadd.f32 0.0, %v1251
    %v1253 = vpop.f32.mrb[0].mxu0
    %1254 = vdwg.mxu0
    %v1255 = vmul.f32 %v1249, 0.17677669
    %v1256 = vmul.f32 %v1252, 0.17677669
    %v1257 = vsel %vm951, %v1255, -1e+30
    %v1258 = vsel %vm952, %v1256, -1e+30
    %v1259 = vsel %vm1008, %v1257, -inf
    %1260 = vmax.xlane.f32.xlu0 %v1259
    %v1261 = vpop.xlane.xlu0 %1260
    %v1262 = vsel %vm1008, %v1258, -inf
    %1263 = vmax.xlane.f32.xlu0 %v1262
    %v1264 = vpop.xlane.xlu0 %1263
    %v1265 = vsub.f32 %v1257, %v1261
    %v1266 = vsub.f32 %v1258, %v1264
    %v1267 = vmul.f32 %v1265, 1.442695
    %v1268 = vpow.pop %v1267
    %v1269 = vmul.f32 %v1266, 1.442695
    %v1270 = vpow.pop %v1269
    %v1271 = vsel %vm1008, %v1268, 0.0
    %1272 = vadd.xlane.f32.xlu0 %v1271
    %v1273 = vpop.xlane.xlu0 %1272
    %v1274 = vsel %vm1008, %v1270, 0.0
    %1275 = vadd.xlane.f32.xlu0 %v1274
    %v1276 = vpop.xlane.xlu0 %1275
    %v1277 = vrcp.pop %v1273
    %v1278 = vmul.f32 %v1268, %v1277
    %v1279 = vrcp.pop %v1276
    %v1280 = vmul.f32 %v1270, %v1279
    %v1281 = vpack.c.bf16 %v1280, %v1278
    %1282 = vrot.lane.b32.xlu0 %v955, 64
    %v1283 = vpop.permute.xlu0 %1282
    %v1286 = vsel %vm1008, %v1281, 0
    %1288 = vmatprep.subr.bf16.mxu0 0
    %1289 = vmatpush1.bf16.msra.mxu0 %v1283
    %1290 = vmatprep.subr.bf16.mxu0 0
    %1291 = vmatpush1.bf16.msra.mxu0 0
    %1292 = vmatprep.subr.bf16.mxu0 0
    %1293 = vmatpush1.bf16.msra.mxu0 0
    %1294 = vmatprep.subr.bf16.mxu0 0
    %1295 = vmatpush1.bf16.msra.mxu0 0
    %1296 = vmatprep.subr.bf16.mxu0 0
    %1297 = vmatpush1.bf16.msra.mxu0 0
    %1298 = vmatprep.subr.bf16.mxu0 0
    %1299 = vmatpush1.bf16.msra.mxu0 0
    %1300 = vmatprep.subr.bf16.mxu0 0
    %1301 = vmatpush1.bf16.msra.mxu0 0
    %1302 = vmatprep.subr.bf16.mxu0 0
    %1303 = vmatpush1.bf16.msra.mxu0 0
    %1304 = vmatprep.subr.bf16.mxu0 0
    %1305 = vmatpush1.bf16.msra.mxu0 0
    %1306 = vmatprep.subr.bf16.mxu0 0
    %1307 = vmatpush1.bf16.msra.mxu0 0
    %1308 = vmatprep.subr.bf16.mxu0 0
    %1309 = vmatpush1.bf16.msra.mxu0 0
    %1310 = vmatprep.subr.bf16.mxu0 0
    %1311 = vmatpush1.bf16.msra.mxu0 0
    %1312 = vmatprep.subr.bf16.mxu0 0
    %1313 = vmatpush1.bf16.msra.mxu0 0
    %1314 = vmatprep.subr.bf16.mxu0 0
    %1315 = vmatpush1.bf16.msra.mxu0 0
    %1316 = vmatprep.subr.bf16.mxu0 0
    %1317 = vmatpush1.bf16.msra.mxu0 0
    %1318 = vmatprep.subr.bf16.mxu0 0
    %1319 = vmatpush1.bf16.msra.mxu0 0
    %1320 = vmatprep.mubr.bf16.mxu0 0
    %1321 = vmatmul.mubr.bf16.gmra.mrb[0].mxu0 %v1286
    %v1322 = vpop.f32.mrb[0].mxu0
    %v1323 = vadd.f32 0.0, %v1322
    %v1324 = vpop.f32.mrb[0].mxu0
    %v1325 = vpop.f32.mrb[0].mxu0
    %v1326 = vadd.f32 0.0, %v1325
    %v1327 = vpop.f32.mrb[0].mxu0
    %1328 = vdwg.mxu0
    %1329 = vrot.lane.b32.xlu0 %v953, 32
    %v1330 = vpop.permute.xlu0 %1329
    %1331 = vrot.lane.b32.xlu0 %v954, 32
    %v1332 = vpop.permute.xlu0 %1331
    %v1334 = vsel %vm956, %v1330, 0
    %v1337 = vsel %vm956, %v1332, 0
    %1339 = vmatprep.subr.bf16.mxu0 0
    %1340 = vmatpush1.bf16.xpose.msra.mxu0 %v1337
    %1341 = vmatprep.subr.bf16.mxu0 0
    %1342 = vmatpush1.bf16.xpose.msra.mxu0 0
    %1343 = vmatprep.subr.bf16.mxu0 0
    %1344 = vmatpush1.bf16.xpose.msra.mxu0 0
    %1345 = vmatprep.subr.bf16.mxu0 0
    %1346 = vmatpush1.bf16.xpose.msra.mxu0 0
    %1347 = vmatprep.subr.bf16.mxu0 0
    %1348 = vmatpush1.bf16.xpose.msra.mxu0 0
    %1349 = vmatprep.subr.bf16.mxu0 0
    %1350 = vmatpush1.bf16.xpose.msra.mxu0 0
    %1351 = vmatprep.subr.bf16.mxu0 0
    %1352 = vmatpush1.bf16.xpose.msra.mxu0 0
    %1353 = vmatprep.subr.bf16.mxu0 0
    %1354 = vmatpush1.bf16.xpose.msra.mxu0 0
    %1355 = vmatprep.subr.bf16.mxu0 0
    %1356 = vmatpush1.bf16.xpose.msra.mxu0 0
    %1357 = vmatprep.subr.bf16.mxu0 0
    %1358 = vmatpush1.bf16.xpose.msra.mxu0 0
    %1359 = vmatprep.subr.bf16.mxu0 0
    %1360 = vmatpush1.bf16.xpose.msra.mxu0 0
    %1361 = vmatprep.subr.bf16.mxu0 0
    %1362 = vmatpush1.bf16.xpose.msra.mxu0 0
    %1363 = vmatprep.subr.bf16.mxu0 0
    %1364 = vmatpush1.bf16.xpose.msra.mxu0 0
    %1365 = vmatprep.subr.bf16.mxu0 0
    %1366 = vmatpush1.bf16.xpose.msra.mxu0 0
    %1367 = vmatprep.subr.bf16.mxu0 0
    %1368 = vmatpush1.bf16.xpose.msra.mxu0 0
    %1369 = vmatprep.subr.bf16.mxu0 0
    %1370 = vmatpush1.bf16.xpose.msra.mxu0 0
    %1371 = vmatprep.mubr.bf16.mxu0 0
    %1372 = vmatmul.mubr.bf16.gmra.mrb[0].mxu0 %v1334
    %v1373 = vpop.f32.mrb[0].mxu0
    %v1374 = vadd.f32 0.0, %v1373
    %v1375 = vpop.f32.mrb[0].mxu0
    %v1376 = vpop.f32.mrb[0].mxu0
    %v1377 = vadd.f32 0.0, %v1376
    %v1378 = vpop.f32.mrb[0].mxu0
    %1379 = vdwg.mxu0
    %v1380 = vmul.f32 %v1374, 0.17677669
    %v1381 = vmul.f32 %v1377, 0.17677669
    %v1382 = vsel %vm951, %v1380, -1e+30
    %v1383 = vsel %vm952, %v1381, -1e+30
    %v1384 = vsel %vm1008, %v1382, -inf
    %1385 = vmax.xlane.f32.xlu0 %v1384
    %v1386 = vpop.xlane.xlu0 %1385
    %v1387 = vsel %vm1008, %v1383, -inf
    %1388 = vmax.xlane.f32.xlu0 %v1387
    %v1389 = vpop.xlane.xlu0 %1388
    %v1390 = vsub.f32 %v1382, %v1386
    %v1391 = vsub.f32 %v1383, %v1389
    %v1392 = vmul.f32 %v1390, 1.442695
    %v1393 = vpow.pop %v1392
    %v1394 = vmul.f32 %v1391, 1.442695
    %v1395 = vpow.pop %v1394
    %v1396 = vsel %vm1008, %v1393, 0.0
    %1397 = vadd.xlane.f32.xlu0 %v1396
    %v1398 = vpop.xlane.xlu0 %1397
    %v1399 = vsel %vm1008, %v1395, 0.0
    %1400 = vadd.xlane.f32.xlu0 %v1399
    %v1401 = vpop.xlane.xlu0 %1400
    %v1402 = vrcp.pop %v1398
    %v1403 = vmul.f32 %v1393, %v1402
    %v1404 = vrcp.pop %v1401
    %v1405 = vmul.f32 %v1395, %v1404
    %v1406 = vpack.c.bf16 %v1405, %v1403
    %1407 = vrot.lane.b32.xlu0 %v955, 32
    %v1408 = vpop.permute.xlu0 %1407
    %v1411 = vsel %vm1008, %v1406, 0
    %1413 = vmatprep.subr.bf16.mxu0 0
    %1414 = vmatpush1.bf16.msra.mxu0 %v1408
    %1415 = vmatprep.subr.bf16.mxu0 0
    %1416 = vmatpush1.bf16.msra.mxu0 0
    %1417 = vmatprep.subr.bf16.mxu0 0
    %1418 = vmatpush1.bf16.msra.mxu0 0
    %1419 = vmatprep.subr.bf16.mxu0 0
    %1420 = vmatpush1.bf16.msra.mxu0 0
    %1421 = vmatprep.subr.bf16.mxu0 0
    %1422 = vmatpush1.bf16.msra.mxu0 0
    %1423 = vmatprep.subr.bf16.mxu0 0
    %1424 = vmatpush1.bf16.msra.mxu0 0
    %1425 = vmatprep.subr.bf16.mxu0 0
    %1426 = vmatpush1.bf16.msra.mxu0 0
    %1427 = vmatprep.subr.bf16.mxu0 0
    %1428 = vmatpush1.bf16.msra.mxu0 0
    %1429 = vmatprep.subr.bf16.mxu0 0
    %1430 = vmatpush1.bf16.msra.mxu0 0
    %1431 = vmatprep.subr.bf16.mxu0 0
    %1432 = vmatpush1.bf16.msra.mxu0 0
    %1433 = vmatprep.subr.bf16.mxu0 0
    %1434 = vmatpush1.bf16.msra.mxu0 0
    %1435 = vmatprep.subr.bf16.mxu0 0
    %1436 = vmatpush1.bf16.msra.mxu0 0
    %1437 = vmatprep.subr.bf16.mxu0 0
    %1438 = vmatpush1.bf16.msra.mxu0 0
    %1439 = vmatprep.subr.bf16.mxu0 0
    %1440 = vmatpush1.bf16.msra.mxu0 0
    %1441 = vmatprep.subr.bf16.mxu0 0
    %1442 = vmatpush1.bf16.msra.mxu0 0
    %1443 = vmatprep.subr.bf16.mxu0 0
    %1444 = vmatpush1.bf16.msra.mxu0 0
    %1445 = vmatprep.mubr.bf16.mxu0 0
    %1446 = vmatmul.mubr.bf16.gmra.mrb[0].mxu0 %v1411
    %v1447 = vpop.f32.mrb[0].mxu0
    %v1448 = vadd.f32 0.0, %v1447
    %v1449 = vpop.f32.mrb[0].mxu0
    %v1450 = vpop.f32.mrb[0].mxu0
    %v1451 = vadd.f32 0.0, %v1450
    %v1452 = vpop.f32.mrb[0].mxu0
    %1453 = vdwg.mxu0
    %1456 = vrot.lane.b32.xlu0 %v1198, 32
    %v1457 = vpop.permute.xlu0 %1456
    %1458 = vrot.lane.b32.xlu0 %v1201, 32
    %v1459 = vpop.permute.xlu0 %1458
    %1464 = vrot.lane.b32.xlu0 %v1323, 64
    %v1465 = vpop.permute.xlu0 %1464
    %1466 = vrot.lane.b32.xlu0 %v1326, 64
    %v1467 = vpop.permute.xlu0 %1466
    %1472 = vrot.lane.b32.xlu0 %v1448, 96
    %v1473 = vpop.permute.xlu0 %1472
    %1474 = vrot.lane.b32.xlu0 %v1451, 96
    %v1475 = vpop.permute.xlu0 %1474
    %v1478 = vsel %vm956, %v1070, %v1457
    %v1479 = vsel %vm956, %v1073, %v1459
    %vm1480 = vcmask 523264
    %v1481 = vsel %vm1480, %v1478, %v1465
    %v1482 = vsel %vm1480, %v1479, %v1467
    %vm1483 = vcmask 785408
    %v1484 = vsel %vm1483, %v1481, %v1473
    %v1485 = vsel %vm1483, %v1482, %v1475
    %v1486 = vpack.c.bf16 %v1485, %v1484
    %s1487 = smul.u32 4, 80
    %s1488 = smul.u32 %s1487, 1
    %s1489 = sshll.u32 %s1488, 4
    %1490 = dma.done [#allocation3], %s1489
    %v1491 = vld [vmem:[#allocation2] sm:$0xff]
    %v1492 = vld [vmem:[#allocation2 + $0x8] sm:$0xff]
    %v1493 = vld [vmem:[#allocation2 + $0x10] sm:$0xff]
    %v1494 = vld [vmem:[#allocation2 + $0x18] sm:$0xff]
    %v1495 = vld [vmem:[#allocation2 + $0x20] sm:$0xff]
    %v1496 = vld [vmem:[#allocation2 + $0x28] sm:$0xff]
    %v1497 = vld [vmem:[#allocation2 + $0x30] sm:$0xff]
    %v1498 = vld [vmem:[#allocation2 + $0x38] sm:$0xff]
    %v1499 = vld [vmem:[#allocation2 + $0x40] sm:$0xff]
    %v1500 = vld [vmem:[#allocation2 + $0x48] sm:$0xff]
    %v1501 = vld [vmem:[#allocation2 + $0x50] sm:$0xff]
    %v1502 = vld [vmem:[#allocation2 + $0x58] sm:$0xff]
    %v1503 = vld [vmem:[#allocation2 + $0x60] sm:$0xff]
    %v1504 = vld [vmem:[#allocation2 + $0x68] sm:$0xff]
    %v1505 = vld [vmem:[#allocation2 + $0x70] sm:$0xff]
    %v1506 = vld [vmem:[#allocation2 + $0x78] sm:$0xff]
    %v1507 = vld [vmem:[#allocation2 + $0x80] sm:$0xff]
    %v1508 = vld [vmem:[#allocation2 + $0x88] sm:$0xff]
    %v1509 = vld [vmem:[#allocation2 + $0x90] sm:$0xff]
    %v1510 = vld [vmem:[#allocation2 + $0x98] sm:$0xff]
    %v1511 = vld [vmem:[#allocation2 + $0xa0] sm:$0xff]
    %v1512 = vld [vmem:[#allocation2 + $0xa8] sm:$0xff]
    %v1513 = vld [vmem:[#allocation2 + $0xb0] sm:$0xff]
    %v1514 = vld [vmem:[#allocation2 + $0xb8] sm:$0xff]
    %v1515 = vld [vmem:[#allocation2 + $0xc0] sm:$0xff]
    %v1516 = vld [vmem:[#allocation2 + $0xc8] sm:$0xff]
    %v1517 = vld [vmem:[#allocation2 + $0xd0] sm:$0xff]
    %v1518 = vld [vmem:[#allocation2 + $0xd8] sm:$0xff]
    %v1519 = vld [vmem:[#allocation2 + $0xe0] sm:$0xff]
    %v1520 = vld [vmem:[#allocation2 + $0xe8] sm:$0xff]
    %v1521 = vld [vmem:[#allocation2 + $0xf0] sm:$0xff]
    %v1522 = vld [vmem:[#allocation2 + $0xf8] sm:$0xff]
    %v1523 = vld [vmem:[#allocation2 + $0x100] sm:$0xff]
    %v1524 = vld [vmem:[#allocation2 + $0x108] sm:$0xff]
    %v1525 = vld [vmem:[#allocation2 + $0x110] sm:$0xff]
    %v1526 = vld [vmem:[#allocation2 + $0x118] sm:$0xff]
    %v1527 = vld [vmem:[#allocation2 + $0x120] sm:$0xff]
    %v1528 = vld [vmem:[#allocation2 + $0x128] sm:$0xff]
    %v1529 = vld [vmem:[#allocation2 + $0x130] sm:$0xff]
    %v1530 = vld [vmem:[#allocation2 + $0x138] sm:$0xff]
    %v1531 = vld [vmem:[#allocation10] sm:$0x1]
    %v1533 = vlaneseq
    %v1534 = vshrl.u32 %v1533, 7
    %v1535 = vsub.s32 0, %v1534
    %v1536 = vrot.slane %v1531, %v1535
    %1538 = vmatprep.subr.bf16.mxu0 0
    %1539 = vmatpush1.bf16.msra.mxu0 %v1491
    %1540 = vmatprep.subr.bf16.mxu0 0
    %1541 = vmatpush1.bf16.msra.mxu0 %v1492
    %1542 = vmatprep.subr.bf16.mxu0 0
    %1543 = vmatpush1.bf16.msra.mxu0 %v1493
    %1544 = vmatprep.subr.bf16.mxu0 0
    %1545 = vmatpush1.bf16.msra.mxu0 %v1494
    %1546 = vmatprep.subr.bf16.mxu0 0
    %1547 = vmatpush1.bf16.msra.mxu0 %v1495
    %1548 = vmatprep.subr.bf16.mxu0 0
    %1549 = vmatpush1.bf16.msra.mxu0 %v1496
    %1550 = vmatprep.subr.bf16.mxu0 0
    %1551 = vmatpush1.bf16.msra.mxu0 %v1497
    %1552 = vmatprep.subr.bf16.mxu0 0
    %1553 = vmatpush1.bf16.msra.mxu0 %v1498
    %1554 = vmatprep.subr.bf16.mxu0 0
    %1555 = vmatpush1.bf16.msra.mxu0 %v1499
    %1556 = vmatprep.subr.bf16.mxu0 0
    %1557 = vmatpush1.bf16.msra.mxu0 %v1500
    %1558 = vmatprep.subr.bf16.mxu0 0
    %1559 = vmatpush1.bf16.msra.mxu0 %v1501
    %1560 = vmatprep.subr.bf16.mxu0 0
    %1561 = vmatpush1.bf16.msra.mxu0 %v1502
    %1562 = vmatprep.subr.bf16.mxu0 0
    %1563 = vmatpush1.bf16.msra.mxu0 %v1503
    %1564 = vmatprep.subr.bf16.mxu0 0
    %1565 = vmatpush1.bf16.msra.mxu0 %v1504
    %1566 = vmatprep.subr.bf16.mxu0 0
    %1567 = vmatpush1.bf16.msra.mxu0 %v1505
    %1568 = vmatprep.subr.bf16.mxu0 0
    %1569 = vmatpush1.bf16.msra.mxu0 %v1506
    %1570 = vmatprep.mubr.bf16.mxu0 %v942
    %1571 = vmatmul.mubr.bf16.gmra.mrb[0].mxu0 %v1486
    %v1572 = vpop.f32.mrb[0].mxu0
    %v1573 = vadd.f32 %v1536, %v1572
    %v1574 = vpop.f32.mrb[0].mxu0
    %v1575 = vpop.f32.mrb[0].mxu0
    %v1576 = vadd.f32 %v1536, %v1575
    %v1577 = vpop.f32.mrb[0].mxu0
    %1578 = vdwg.mxu0
    %1579 = vmatprep.subr.bf16.mxu0 0
    %1580 = vmatpush1.bf16.msra.mxu0 %v1507
    %1581 = vmatprep.subr.bf16.mxu0 0
    %1582 = vmatpush1.bf16.msra.mxu0 %v1508
    %1583 = vmatprep.subr.bf16.mxu0 0
    %1584 = vmatpush1.bf16.msra.mxu0 %v1509
    %1585 = vmatprep.subr.bf16.mxu0 0
    %1586 = vmatpush1.bf16.msra.mxu0 %v1510
    %1587 = vmatprep.subr.bf16.mxu0 0
    %1588 = vmatpush1.bf16.msra.mxu0 %v1511
    %1589 = vmatprep.subr.bf16.mxu0 0
    %1590 = vmatpush1.bf16.msra.mxu0 %v1512
    %1591 = vmatprep.subr.bf16.mxu0 0
    %1592 = vmatpush1.bf16.msra.mxu0 %v1513
    %1593 = vmatprep.subr.bf16.mxu0 0
    %1594 = vmatpush1.bf16.msra.mxu0 %v1514
    %1595 = vmatprep.subr.bf16.mxu0 0
    %1596 = vmatpush1.bf16.msra.mxu0 %v1515
    %1597 = vmatprep.subr.bf16.mxu0 0
    %1598 = vmatpush1.bf16.msra.mxu0 %v1516
    %1599 = vmatprep.subr.bf16.mxu0 0
    %1600 = vmatpush1.bf16.msra.mxu0 %v1517
    %1601 = vmatprep.subr.bf16.mxu0 0
    %1602 = vmatpush1.bf16.msra.mxu0 %v1518
    %1603 = vmatprep.subr.bf16.mxu0 0
    %1604 = vmatpush1.bf16.msra.mxu0 %v1519
    %1605 = vmatprep.subr.bf16.mxu0 0
    %1606 = vmatpush1.bf16.msra.mxu0 %v1520
    %1607 = vmatprep.subr.bf16.mxu0 0
    %1608 = vmatpush1.bf16.msra.mxu0 %v1521
    %1609 = vmatprep.subr.bf16.mxu0 0
    %1610 = vmatpush1.bf16.msra.mxu0 %v1522
    %1611 = vmatprep.mubr.bf16.mxu0 %v944
    %1612 = vmatmul.mubr.bf16.gmra.mrb[0].mxu0 %v943
    %v1613 = vpop.f32.mrb[0].mxu0
    %v1614 = vadd.f32 %v1573, %v1613
    %v1615 = vpop.f32.mrb[0].mxu0
    %v1616 = vpop.f32.mrb[0].mxu0
    %v1617 = vadd.f32 %v1576, %v1616
    %v1618 = vpop.f32.mrb[0].mxu0
    %1619 = vdwg.mxu0
    %1620 = vmatprep.subr.bf16.mxu0 0
    %1621 = vmatpush1.bf16.msra.mxu0 %v1523
    %1622 = vmatprep.subr.bf16.mxu0 0
    %1623 = vmatpush1.bf16.msra.mxu0 %v1524
    %1624 = vmatprep.subr.bf16.mxu0 0
    %1625 = vmatpush1.bf16.msra.mxu0 %v1525
    %1626 = vmatprep.subr.bf16.mxu0 0
    %1627 = vmatpush1.bf16.msra.mxu0 %v1526
    %1628 = vmatprep.subr.bf16.mxu0 0
    %1629 = vmatpush1.bf16.msra.mxu0 %v1527
    %1630 = vmatprep.subr.bf16.mxu0 0
    %1631 = vmatpush1.bf16.msra.mxu0 %v1528
    %1632 = vmatprep.subr.bf16.mxu0 0
    %1633 = vmatpush1.bf16.msra.mxu0 %v1529
    %1634 = vmatprep.subr.bf16.mxu0 0
    %1635 = vmatpush1.bf16.msra.mxu0 %v1530
    %1636 = vmatprep.subr.bf16.mxu0 0
    %1637 = vmatpush1.bf16.msra.mxu0 0
    %1638 = vmatprep.subr.bf16.mxu0 0
    %1639 = vmatpush1.bf16.msra.mxu0 0
    %1640 = vmatprep.subr.bf16.mxu0 0
    %1641 = vmatpush1.bf16.msra.mxu0 0
    %1642 = vmatprep.subr.bf16.mxu0 0
    %1643 = vmatpush1.bf16.msra.mxu0 0
    %1644 = vmatprep.subr.bf16.mxu0 0
    %1645 = vmatpush1.bf16.msra.mxu0 0
    %1646 = vmatprep.subr.bf16.mxu0 0
    %1647 = vmatpush1.bf16.msra.mxu0 0
    %1648 = vmatprep.subr.bf16.mxu0 0
    %1649 = vmatpush1.bf16.msra.mxu0 0
    %1650 = vmatprep.subr.bf16.mxu0 0
    %1651 = vmatpush1.bf16.msra.mxu0 0
    %1652 = vmatprep.mubr.bf16.mxu0 0
    %1653 = vmatmul.mubr.bf16.gmra.mrb[0].mxu0 %v945
    %v1654 = vpop.f32.mrb[0].mxu0
    %v1655 = vadd.f32 %v1614, %v1654
    %v1656 = vpop.f32.mrb[0].mxu0
    %v1657 = vpop.f32.mrb[0].mxu0
    %v1658 = vadd.f32 %v1617, %v1657
    %v1659 = vpop.f32.mrb[0].mxu0
    %1660 = vdwg.mxu0
    %1661 = vst [vmem:[#allocation13] sm:$0xff] %v1655
    %1662 = vst [vmem:[#allocation13 + $0x8] sm:$0xff] %v1658
    // Predicated region
    $region62: #{gptj_layer_forward.1} parent=1 // pred_check
      _
    $region63: #{gptj_layer_forward.1} parent=1 // pred_check_branch
      %1664 = sbr.rel (0) target = $region65
    $region64: #{gptj_layer_forward.1} parent=1 // pred_region
      %s1666 = ssub.s32 256, 256
      %1667 = vsyncadd [#allocation6], %s1666
      %s1668 = sshll.u32 [#allocation13], 4
      %s1669 = int_to_ptr.vmem [resolvable:$true] %s1668
      %1674 = dma.vmem_to_hbm [thread:$0]  %s1669, 256, %s10, [#allocation6], 128, 128, 8
    $region65: #{gptj_layer_forward.1} parent=1 // pred_fallthru
      _
    // Predicated region
    $region66: #{gptj_layer_forward.1} parent=1 // pred_check
      _
    $region67: #{gptj_layer_forward.1} parent=1 // pred_check_branch
      %1676 = sbr.rel (0) target = $region69
    $region68: #{gptj_layer_forward.1} parent=1 // pred_region
      %s1678 = ssub.s32 256, 256
      %1679 = vsyncadd [#allocation15], %s1678
      %s1680 = sshll.u32 [#allocation14], 4
      %s1681 = int_to_ptr.vmem [resolvable:$true] %s1680
      %1686 = dma.vmem_to_hbm [thread:$0]  %s1681, 256, %s11, [#allocation15], 128, 128, 8
    $region69: #{gptj_layer_forward.1} parent=1 // pred_fallthru
      _
    // Predicated region
    $region70: #{gptj_layer_forward.1} parent=1 // pred_check
      _
    $region71: #{gptj_layer_forward.1} parent=1 // pred_check_branch
      %1688 = sbr.rel (0) target = $region73
    $region72: #{gptj_layer_forward.1} parent=1 // pred_region
      %1689 = dma.done [#allocation6], 256
    $region73: #{gptj_layer_forward.1} parent=1 // pred_fallthru
      _
    // Predicated region
    $region74: #{gptj_layer_forward.1} parent=1 // pred_check
      _
    $region75: #{gptj_layer_forward.1} parent=1 // pred_check_branch
      %1691 = sbr.rel (0) target = $region77
    $region76: #{gptj_layer_forward.1} parent=1 // pred_region
      %1692 = dma.done [#allocation15], 256
    $region77: #{gptj_layer_forward.1} parent=1 // pred_fallthru
      _
    %1693 = vsyncpa [#allocation5], 1
    %1694 = vsyncpa [#allocation8], 1
    %1695 = vsyncpa [#allocation11], 1
    %1696 = vsyncpa [#allocation6], 1
    %1697 = vsyncpa [#allocation15], 1
  %1698 = vsyncmov [#allocation3]
  %s1699 = vpop.sfrf %1698
  %p1700 = scmp.eq.s32.totalorder %s1699, 0
  %p1701 = pneg %p1700
  %1703 = shalt.err (%p1701)

</llo_original>
